<compile_context>
chip_gen: v7x
topology: tpu7x:2x2x1
jax: 0.10.0
libtpu: 0.0.40
codegen_flags: <defaults>
</compile_context>

<pallas_src>
import numpy as np

import jax
import jax.numpy as jnp
from jax.experimental import pallas as pl
from jax.experimental.pallas import tpu as pltpu

# ---------------------------------------------------------------------------
# Small, deterministic model configuration.
# ---------------------------------------------------------------------------
BATCH = 2
SEQ = 8
INPUT_DIM = 16
D_MODEL = 32
NHEAD = 4
DHEAD = D_MODEL // NHEAD
NUM_LAYERS = 2
DIM_FF = 64                      # (PyTorch default is 2048; scaled down)
OUTPUT_DIM = 1
DECODER_HIDDEN_DIMS = [D_MODEL, 16, OUTPUT_DIM]
DECODER_ACTIVATION = "relu"
DEC_H1 = DECODER_HIDDEN_DIMS[1]
LN_EPS = 1e-5

TOKENS = BATCH * SEQ             # folded token axis (T = 16)
HT = NHEAD * TOKENS              # folded (head, token) axis (64)
HD = NHEAD * D_MODEL             # block-stacked feature axis (128)
LANE = 128

# --- packed bf16 weight-slab layout (rows; every block starts at a x16 row) ---
W_LSTRIDE = 480
WQ_OFF, WK_OFF, WVO_OFF, WF1_OFF, WF2_OFF = 0, 128, 256, 384, 416
W_GLOBAL = NUM_LAYERS * W_LSTRIDE            # 960
WIN_OFF = W_GLOBAL                           # w_in:  16 rows x 32 cols
WD1_OFF = W_GLOBAL + 16                      # w_d1:  32 rows x 16 cols
W_ROWS = W_GLOBAL + 48                       # 1008

# --- packed f32 vector-slab layout (rows; every block starts at a x8 row) ---
V_LSTRIDE = 136
BQ_OFF, BK_OFF, VEC_OFF = 0, 64, 128         # bq rows, bk rows, 7 misc vectors
V_GLOBAL = NUM_LAYERS * V_LSTRIDE            # 272: [b_in, b_d1, w_d2_row, b_d2]
V_ROWS = V_GLOBAL + 8                        # 280


def _layer_norm(x, gamma, beta, eps=LN_EPS):
    mu = jnp.mean(x, axis=-1, keepdims=True)
    var = jnp.mean((x - mu) ** 2, axis=-1, keepdims=True)
    return (x - mu) * jax.lax.rsqrt(var + eps) * gamma + beta


# ---------------------------------------------------------------------------
# Pallas kernel: single invocation, the whole (tiny) weight set resident in VMEM.
# ---------------------------------------------------------------------------
def _mortality_transformer_kernel(x_ref, w_ref, v_ref, out_ref):
    f32, bf16 = jnp.float32, jnp.bfloat16
    T, D, F, H, dh = TOKENS, D_MODEL, DIM_FF, NHEAD, DHEAD

    # ---- global vectors (one packed load, static row slices) ----
    gvec = v_ref[V_GLOBAL:V_GLOBAL + 8, :]               # (8, 128) f32
    b_in = gvec[0:1, :D]
    b_d1 = gvec[1:2, :DEC_H1]
    w_d2_row = gvec[2:3, :DEC_H1]
    b_d2 = gvec[3:4, 0:1]

    # ---- block-diagonal attention mask, built ONCE (hoisted out of the loop) ----
    # Folded row index = h*T + b*S + s; (row >> 3) identifies (head, sample).
    arow = jax.lax.broadcasted_iota(jnp.int32, (HT, HT), 0)
    acol = jax.lax.broadcasted_iota(jnp.int32, (HT, HT), 1)
    attn_mask = jnp.where((arow >> 3) == (acol >> 3), 0.0, -1e30).astype(f32)

    # ---- input projection over all B*S tokens (bf16 operands, f32 accum) ----
    h = jnp.dot(x_ref[...].astype(bf16), w_ref[WIN_OFF:WIN_OFF + INPUT_DIM, :D],
                preferred_element_type=f32) + b_in        # (T, D) f32

    zeros_blk = jnp.zeros((T, D), f32)

    # ---- transformer encoder layers (post-LN, ReLU FFN, dropout = identity) ----
    for l in range(NUM_LAYERS):
        wb = l * W_LSTRIDE
        vb = l * V_LSTRIDE

        bq = v_ref[vb + BQ_OFF: vb + BQ_OFF + HT, :dh]     # (64, 8) f32 (pre-scaled)
        bk = v_ref[vb + BK_OFF: vb + BK_OFF + HT, :dh]     # (64, 8) f32
        vecs = v_ref[vb + VEC_OFF: vb + VEC_OFF + 8, :]    # (8, 128) f32
        b_attn = vecs[0:1, :D]                             # b_o + b_v @ W_o
        ln1_g, ln1_b = vecs[1:2, :D], vecs[2:3, :D]
        b_ff1 = vecs[3:4, :F]
        b_ff2 = vecs[4:5, :D]
        ln2_g, ln2_b = vecs[5:6, :D], vecs[6:7, :D]

        # Block-diagonal replication of the token slab: row (h, t), col (h', c),
        # non-zero only for h == h'.  Built with lane/sublane concatenates.
        row_blocks = []
        for hh in range(H):
            pieces = [zeros_blk] * hh + [h] + [zeros_blk] * (H - 1 - hh)
            row_blocks.append(jnp.concatenate(pieces, axis=1))        # (T, 128)
        x_blk = jnp.concatenate(row_blocks, axis=0).astype(bf16)      # (64, 128)

        # Head-major projections: one matmul each against block-stacked weights.
        q_f = jnp.dot(x_blk, w_ref[wb + WQ_OFF: wb + WQ_OFF + HD, :dh],
                      preferred_element_type=f32) + bq                # (64, 8)
        k_f = jnp.dot(x_blk, w_ref[wb + WK_OFF: wb + WK_OFF + HD, :dh],
                      preferred_element_type=f32) + bk                # (64, 8)
        # V projection with W_o folded in at prep time -> already in model dim.
        vo = jnp.dot(x_blk, w_ref[wb + WVO_OFF: wb + WVO_OFF + HD, :D],
                     preferred_element_type=f32)                      # (64, 32)

        # Fused block-diagonal attention: one (64,64) score matmul for all
        # heads + samples; softmax math stays in f32.
        s = jax.lax.dot_general(q_f.astype(bf16), k_f.astype(bf16),
                                (((1,), (1,)), ((), ())),
                                preferred_element_type=f32)           # (64, 64)
        s = s + attn_mask
        m = jnp.max(s, axis=-1, keepdims=True)
        e = jnp.exp(s - m)
        p = e * pl.reciprocal(jnp.sum(e, axis=-1, keepdims=True), approx=True)

        ctx = jnp.dot(p.astype(bf16), vo.astype(bf16),
                      preferred_element_type=f32)                     # (64, 32)
        # Sum the per-head (already out-projected) contributions: 3 VPU adds.
        attn = ctx[0:T] + ctx[T:2 * T] + ctx[2 * T:3 * T] + ctx[3 * T:4 * T] + b_attn

        h = _layer_norm(h + attn, ln1_g, ln1_b)

        ff = jnp.dot(h.astype(bf16), w_ref[wb + WF1_OFF: wb + WF1_OFF + D, :F],
                     preferred_element_type=f32) + b_ff1
        ff = jnp.maximum(ff, 0.0)                          # PyTorch default relu
        ff = jnp.dot(ff.astype(bf16), w_ref[wb + WF2_OFF: wb + WF2_OFF + F, :D],
                     preferred_element_type=f32) + b_ff2

        h = _layer_norm(h + ff, ln2_g, ln2_b)

    # ---- output head: Linear -> ReLU -> Linear(16 -> 1); last layer on the VPU ----
    dec = jnp.dot(h.astype(bf16), w_ref[WD1_OFF:WD1_OFF + D, :DEC_H1],
                  preferred_element_type=f32) + b_d1
    dec = jnp.maximum(dec, 0.0)
    out_col = jnp.sum(dec * w_d2_row, axis=-1, keepdims=True) + b_d2   # (T, 1)

    # lane-dense writeback (wrapper slices column 0)
    out_ref[...] = jnp.broadcast_to(out_col, (T, LANE))


# ---------------------------------------------------------------------------
# Wrapper: whole arrays in VMEM (no grid); output slab sliced back to (B,S,1).
# ---------------------------------------------------------------------------
def mortality_transformer_forward(x, kp):
    B, S, _ = x.shape
    assert (B, S) == (BATCH, SEQ)
    x2 = x.reshape(TOKENS, INPUT_DIM)

    out_slab = pl.pallas_call(
        _mortality_transformer_kernel,
        out_shape=jax.ShapeDtypeStruct((TOKENS, LANE), jnp.float32),
        in_specs=[pl.BlockSpec(memory_space=pltpu.MemorySpace.VMEM)] * 3,
        out_specs=pl.BlockSpec(memory_space=pltpu.MemorySpace.VMEM),
    )(x2, kp["wslab"], kp["vslab"])

    return out_slab[:, :OUTPUT_DIM].reshape(B, S, OUTPUT_DIM)


# ---------------------------------------------------------------------------
# One-time parameter layout prep (NOT per-call work): block-stacked head-major
# weights (W_o folded into W_v), folded 1/sqrt(dh) scale, and two packed slabs.
# ---------------------------------------------------------------------------
def prep_kernel_params(p):
    L, D, F, H, dh = NUM_LAYERS, D_MODEL, DIM_FF, NHEAD, DHEAD
    T = TOKENS
    scale = jnp.float32(1.0 / np.sqrt(dh))

    wslab = jnp.zeros((W_ROWS, LANE), jnp.float32)
    vslab = jnp.zeros((V_ROWS, LANE), jnp.float32)

    def put_mat(slab, row, mat):
        mat = jnp.asarray(mat, jnp.float32)
        r, c = mat.shape
        return slab.at[row:row + r, :c].set(mat)

    def put_vec(slab, row, vec):
        vec = jnp.asarray(vec, jnp.float32).reshape(1, -1)
        return slab.at[row:row + 1, :vec.shape[1]].set(vec)

    for l in range(L):
        wq_cols = p["w_qkv"][l][:, 0 * D:1 * D]     # (c, h*dh + d)
        wk_cols = p["w_qkv"][l][:, 1 * D:2 * D]
        wv_cols = p["w_qkv"][l][:, 2 * D:3 * D]

        # (c, H, dh) -> (H, c, dh) -> block rows h*D + c
        wq_blk = jnp.transpose(wq_cols.reshape(D, H, dh), (1, 0, 2)).reshape(HD, dh) * scale
        wk_blk = jnp.transpose(wk_cols.reshape(D, H, dh), (1, 0, 2)).reshape(HD, dh)
        wv_h = jnp.transpose(wv_cols.reshape(D, H, dh), (1, 0, 2))        # (H, c, dh)
        wo_h = p["w_o"][l].reshape(H, dh, D)                              # (H, dh, e)
        wvo_blk = jnp.einsum("hcd,hde->hce", wv_h, wo_h).reshape(HD, D)   # V . W_o fold

        wb = l * W_LSTRIDE
        wslab = put_mat(wslab, wb + WQ_OFF, wq_blk)
        wslab = put_mat(wslab, wb + WK_OFF, wk_blk)
        wslab = put_mat(wslab, wb + WVO_OFF, wvo_blk)
        wslab = put_mat(wslab, wb + WF1_OFF, p["w_ff1"][l])
        wslab = put_mat(wslab, wb + WF2_OFF, p["w_ff2"][l])

        bq = (p["b_qkv"][l][0 * D:1 * D] * scale).reshape(H, 1, dh)
        bk = p["b_qkv"][l][1 * D:2 * D].reshape(H, 1, dh)
        bq_rows = jnp.broadcast_to(bq, (H, T, dh)).reshape(HT, dh)
        bk_rows = jnp.broadcast_to(bk, (H, T, dh)).reshape(HT, dh)
        bv = p["b_qkv"][l][2 * D:3 * D]
        b_attn_eff = p["b_o"][l] + bv @ p["w_o"][l]       # softmax rows sum to 1

        vb = l * V_LSTRIDE
        vslab = put_mat(vslab, vb + BQ_OFF, bq_rows)
        vslab = put_mat(vslab, vb + BK_OFF, bk_rows)
        vslab = put_vec(vslab, vb + VEC_OFF + 0, b_attn_eff)
        vslab = put_vec(vslab, vb + VEC_OFF + 1, p["ln1_g"][l])
        vslab = put_vec(vslab, vb + VEC_OFF + 2, p["ln1_b"][l])
        vslab = put_vec(vslab, vb + VEC_OFF + 3, p["b_ff1"][l])
        vslab = put_vec(vslab, vb + VEC_OFF + 4, p["b_ff2"][l])
        vslab = put_vec(vslab, vb + VEC_OFF + 5, p["ln2_g"][l])
        vslab = put_vec(vslab, vb + VEC_OFF + 6, p["ln2_b"][l])

    wslab = put_mat(wslab, WIN_OFF, p["w_in"])
    wslab = put_mat(wslab, WD1_OFF, p["w_d1"])
    vslab = put_vec(vslab, V_GLOBAL + 0, p["b_in"])
    vslab = put_vec(vslab, V_GLOBAL + 1, p["b_d1"])
    vslab = put_vec(vslab, V_GLOBAL + 2, p["w_d2"][:, 0])
    vslab = put_vec(vslab, V_GLOBAL + 3, p["b_d2"])

    return {"wslab": wslab.astype(jnp.bfloat16), "vslab": vslab}


# ---------------------------------------------------------------------------
# Pure-JAX reference (natural PyTorch-style parameters, f32) for correctness.
# ---------------------------------------------------------------------------
def reference_forward(x, p):
    d, dh = D_MODEL, DHEAD
    scale = 1.0 / np.sqrt(dh)

    def one(xb):
        h = xb @ p["w_in"] + p["b_in"]
        for l in range(NUM_LAYERS):
            qkv = h @ p["w_qkv"][l] + p["b_qkv"][l]
            q, k, v = qkv[:, :d] * scale, qkv[:, d:2 * d], qkv[:, 2 * d:]
            outs = []
            for hd in range(NHEAD):
                sl = slice(hd * dh, (hd + 1) * dh)
                s = q[:, sl] @ k[:, sl].T
                s = s - jnp.max(s, axis=-1, keepdims=True)
                pr = jnp.exp(s)
                pr = pr / jnp.sum(pr, axis=-1, keepdims=True)
                outs.append(pr @ v[:, sl])
            attn = jnp.concatenate(outs, axis=-1) @ p["w_o"][l] + p["b_o"][l]
            h = _layer_norm(h + attn, p["ln1_g"][l], p["ln1_b"][l])
            ff = jnp.maximum(h @ p["w_ff1"][l] + p["b_ff1"][l], 0.0)
            ff = ff @ p["w_ff2"][l] + p["b_ff2"][l]
            h = _layer_norm(h + ff, p["ln2_g"][l], p["ln2_b"][l])
        dec = jnp.maximum(h @ p["w_d1"] + p["b_d1"], 0.0)
        return dec @ p["w_d2"] + p["b_d2"]

    return jax.vmap(one)(x)


# ---------------------------------------------------------------------------
# Deterministic synthetic parameters (weights stored as (in_dim, out_dim)).
# ---------------------------------------------------------------------------
def init_params(key):
    D, F, L = D_MODEL, DIM_FF, NUM_LAYERS
    H1 = DEC_H1
    ks = jax.random.split(key, 18)

    def nrm(k, shape, s=0.05):
        return jax.random.normal(k, shape, dtype=jnp.float32) * s

    return {
        "w_in": nrm(ks[0], (INPUT_DIM, D)),
        "b_in": nrm(ks[1], (D,)),
        "w_qkv": nrm(ks[2], (L, D, 3 * D)),
        "b_qkv": nrm(ks[3], (L, 3 * D)),
        "w_o": nrm(ks[4], (L, D, D)),
        "b_o": nrm(ks[5], (L, D)),
        "ln1_g": jnp.ones((L, D), jnp.float32) + nrm(ks[6], (L, D), 0.01),
        "ln1_b": nrm(ks[7], (L, D), 0.01),
        "w_ff1": nrm(ks[8], (L, D, F)),
        "b_ff1": nrm(ks[9], (L, F)),
        "w_ff2": nrm(ks[10], (L, F, D)),
        "b_ff2": nrm(ks[11], (L, D)),
        "ln2_g": jnp.ones((L, D), jnp.float32) + nrm(ks[12], (L, D), 0.01),
        "ln2_b": nrm(ks[13], (L, D), 0.01),
        "w_d1": nrm(ks[14], (D, H1)),
        "b_d1": nrm(ks[15], (H1,)),
        "w_d2": nrm(ks[16], (H1, OUTPUT_DIM)),
        "b_d2": nrm(ks[17], (OUTPUT_DIM,)),
    }


if __name__ == "__main__":
    key = jax.random.PRNGKey(0)
    k_x, k_p = jax.random.split(key)

    x = jax.random.normal(k_x, (BATCH, SEQ, INPUT_DIM), dtype=jnp.float32)
    params = init_params(k_p)
    kernel_params = prep_kernel_params(params)   # one-time layout transform

    out = jax.block_until_ready(mortality_transformer_forward(x, kernel_params))
    ref = jax.block_until_ready(reference_forward(x, params))

    # Tolerance covers bf16 matmul operands (f32 accumulation) and the EUP
    # approximate reciprocal in the softmax; reference is full f32.
    np.testing.assert_allclose(np.asarray(out), np.asarray(ref), rtol=2e-2, atol=2e-2)
    assert out.shape == (BATCH, SEQ, OUTPUT_DIM)

    print("KERNEL_OK")
</pallas_src>

<mosaic_0001>
module attributes {stable_mosaic.version = 11 : i64} {
  func.func @_mortality_transformer_kernel(%arg0: memref<16x16xf32, #tpu.memory_space<vmem>>, %arg1: memref<1008x128xbf16, #tpu.memory_space<vmem>>, %arg2: memref<280x128xf32, #tpu.memory_space<vmem>>, %arg3: memref<16x128xf32, #tpu.memory_space<vmem>>) attributes {dimension_semantics = [], scalar_prefetch = 0 : i64, scratch_operands = 0 : i64, tpu.core_type = #tpu.core_type<tc>} {
    %c272 = arith.constant 272 : index
    %c0 = arith.constant 0 : index
    %0 = vector.load %arg2[%c272, %c0] : memref<280x128xf32, #tpu.memory_space<vmem>>, vector<8x128xf32>
    %1 = vector.extract_strided_slice %0 {offsets = [0, 0], sizes = [1, 32], strides = [1, 1]} : vector<8x128xf32> to vector<1x32xf32>
    %2 = vector.extract_strided_slice %0 {offsets = [1, 0], sizes = [1, 16], strides = [1, 1]} : vector<8x128xf32> to vector<1x16xf32>
    %3 = vector.extract_strided_slice %0 {offsets = [2, 0], sizes = [1, 16], strides = [1, 1]} : vector<8x128xf32> to vector<1x16xf32>
    %4 = vector.extract_strided_slice %0 {offsets = [3, 0], sizes = [1, 1], strides = [1, 1]} : vector<8x128xf32> to vector<1x1xf32>
    %5 = tpu.iota {dimensions = array<i32: 0>} : vector<64x64xi32>
    %6 = tpu.iota {dimensions = array<i32: 1>} : vector<64x64xi32>
    %c3_i32 = arith.constant 3 : i32
    %7 = vector.broadcast %c3_i32 : i32 to vector<64x64xi32>
    %8 = arith.shrsi %5, %7 : vector<64x64xi32>
    %c3_i32_0 = arith.constant 3 : i32
    %9 = vector.broadcast %c3_i32_0 : i32 to vector<64x64xi32>
    %10 = arith.shrsi %6, %9 : vector<64x64xi32>
    %11 = arith.cmpi eq, %8, %10 : vector<64x64xi32>
    %cst = arith.constant 0.000000e+00 : f32
    %cst_1 = arith.constant -1.000000e+30 : f32
    %12 = vector.broadcast %cst : f32 to vector<64x64xf32>
    %13 = vector.broadcast %cst_1 : f32 to vector<64x64xf32>
    %14 = arith.select %11, %12, %13 : vector<64x64xi1>, vector<64x64xf32>
    %c0_2 = arith.constant 0 : index
    %c0_3 = arith.constant 0 : index
    %15 = vector.load %arg0[%c0_2, %c0_3] : memref<16x16xf32, #tpu.memory_space<vmem>>, vector<16x16xf32>
    %16 = arith.truncf %15 : vector<16x16xf32> to vector<16x16xbf16>
    %c960 = arith.constant 960 : index
    %c0_4 = arith.constant 0 : index
    %17 = vector.load %arg1[%c960, %c0_4] : memref<1008x128xbf16, #tpu.memory_space<vmem>>, vector<16x32xbf16>
    %cst_5 = arith.constant dense<0.000000e+00> : vector<16x32xf32>
    %18 = tpu.matmul %16, %17, %cst_5 {dimension_numbers = #tpu.dot_dimension_numbers<[1], [0], [0], [1], [0, 0, 1, 1], [], []>} : vector<16x16xbf16>, vector<16x32xbf16>, vector<16x32xf32> -> vector<16x32xf32>
    %19 = vector.broadcast %1 : vector<1x32xf32> to vector<16x32xf32>
    %20 = arith.addf %18, %19 : vector<16x32xf32>
    %cst_6 = arith.constant 0.000000e+00 : f32
    %21 = vector.broadcast %cst_6 : f32 to vector<16x32xf32>
    %c0_7 = arith.constant 0 : index
    %c0_8 = arith.constant 0 : index
    %22 = vector.load %arg2[%c0_7, %c0_8] : memref<280x128xf32, #tpu.memory_space<vmem>>, vector<64x8xf32>
    %c64 = arith.constant 64 : index
    %c0_9 = arith.constant 0 : index
    %23 = vector.load %arg2[%c64, %c0_9] : memref<280x128xf32, #tpu.memory_space<vmem>>, vector<64x8xf32>
    %c128 = arith.constant 128 : index
    %c0_10 = arith.constant 0 : index
    %24 = vector.load %arg2[%c128, %c0_10] : memref<280x128xf32, #tpu.memory_space<vmem>>, vector<8x128xf32>
    %25 = vector.extract_strided_slice %24 {offsets = [0, 0], sizes = [1, 32], strides = [1, 1]} : vector<8x128xf32> to vector<1x32xf32>
    %26 = vector.extract_strided_slice %24 {offsets = [1, 0], sizes = [1, 32], strides = [1, 1]} : vector<8x128xf32> to vector<1x32xf32>
    %27 = vector.extract_strided_slice %24 {offsets = [2, 0], sizes = [1, 32], strides = [1, 1]} : vector<8x128xf32> to vector<1x32xf32>
    %28 = vector.extract_strided_slice %24 {offsets = [3, 0], sizes = [1, 64], strides = [1, 1]} : vector<8x128xf32> to vector<1x64xf32>
    %29 = vector.extract_strided_slice %24 {offsets = [4, 0], sizes = [1, 32], strides = [1, 1]} : vector<8x128xf32> to vector<1x32xf32>
    %30 = vector.extract_strided_slice %24 {offsets = [5, 0], sizes = [1, 32], strides = [1, 1]} : vector<8x128xf32> to vector<1x32xf32>
    %31 = vector.extract_strided_slice %24 {offsets = [6, 0], sizes = [1, 32], strides = [1, 1]} : vector<8x128xf32> to vector<1x32xf32>
    %32 = tpu.concatenate %20, %21, %21, %21 in 1 : vector<16x32xf32>, vector<16x32xf32>, vector<16x32xf32>, vector<16x32xf32> -> vector<16x128xf32>
    %33 = tpu.concatenate %21, %20, %21, %21 in 1 : vector<16x32xf32>, vector<16x32xf32>, vector<16x32xf32>, vector<16x32xf32> -> vector<16x128xf32>
    %34 = tpu.concatenate %21, %21, %20, %21 in 1 : vector<16x32xf32>, vector<16x32xf32>, vector<16x32xf32>, vector<16x32xf32> -> vector<16x128xf32>
    %35 = tpu.concatenate %21, %21, %21, %20 in 1 : vector<16x32xf32>, vector<16x32xf32>, vector<16x32xf32>, vector<16x32xf32> -> vector<16x128xf32>
    %36 = tpu.concatenate %32, %33, %34, %35 in 0 : vector<16x128xf32>, vector<16x128xf32>, vector<16x128xf32>, vector<16x128xf32> -> vector<64x128xf32>
    %37 = arith.truncf %36 : vector<64x128xf32> to vector<64x128xbf16>
    %c0_11 = arith.constant 0 : index
    %c0_12 = arith.constant 0 : index
    %38 = vector.load %arg1[%c0_11, %c0_12] : memref<1008x128xbf16, #tpu.memory_space<vmem>>, vector<128x8xbf16>
    %cst_13 = arith.constant dense<0.000000e+00> : vector<64x8xf32>
    %39 = tpu.matmul %37, %38, %cst_13 {dimension_numbers = #tpu.dot_dimension_numbers<[1], [0], [0], [1], [0, 0, 1, 1], [], []>} : vector<64x128xbf16>, vector<128x8xbf16>, vector<64x8xf32> -> vector<64x8xf32>
    %40 = arith.addf %39, %22 : vector<64x8xf32>
    %c128_14 = arith.constant 128 : index
    %c0_15 = arith.constant 0 : index
    %41 = vector.load %arg1[%c128_14, %c0_15] : memref<1008x128xbf16, #tpu.memory_space<vmem>>, vector<128x8xbf16>
    %cst_16 = arith.constant dense<0.000000e+00> : vector<64x8xf32>
    %42 = tpu.matmul %37, %41, %cst_16 {dimension_numbers = #tpu.dot_dimension_numbers<[1], [0], [0], [1], [0, 0, 1, 1], [], []>} : vector<64x128xbf16>, vector<128x8xbf16>, vector<64x8xf32> -> vector<64x8xf32>
    %43 = arith.addf %42, %23 : vector<64x8xf32>
    %c256 = arith.constant 256 : index
    %c0_17 = arith.constant 0 : index
    %44 = vector.load %arg1[%c256, %c0_17] : memref<1008x128xbf16, #tpu.memory_space<vmem>>, vector<128x32xbf16>
    %cst_18 = arith.constant dense<0.000000e+00> : vector<64x32xf32>
    %45 = tpu.matmul %37, %44, %cst_18 {dimension_numbers = #tpu.dot_dimension_numbers<[1], [0], [0], [1], [0, 0, 1, 1], [], []>} : vector<64x128xbf16>, vector<128x32xbf16>, vector<64x32xf32> -> vector<64x32xf32>
    %46 = arith.truncf %40 : vector<64x8xf32> to vector<64x8xbf16>
    %47 = arith.truncf %43 : vector<64x8xf32> to vector<64x8xbf16>
    %cst_19 = arith.constant dense<0.000000e+00> : vector<64x64xf32>
    %48 = tpu.matmul %46, %47, %cst_19 {dimension_numbers = #tpu.dot_dimension_numbers<[1], [1], [0], [0], [0, 0, 1, 0], [], []>} : vector<64x8xbf16>, vector<64x8xbf16>, vector<64x64xf32> -> vector<64x64xf32>
    %49 = arith.addf %48, %14 : vector<64x64xf32>
    %cst_20 = arith.constant dense<0xFF800000> : vector<64xf32>
    %50 = vector.multi_reduction <maximumf>, %49, %cst_20 [1] : vector<64x64xf32> to vector<64xf32>
    %51 = vector.shape_cast %50 : vector<64xf32> to vector<64x1xf32>
    %52 = vector.broadcast %51 : vector<64x1xf32> to vector<64x64xf32>
    %53 = arith.subf %49, %52 : vector<64x64xf32>
    %54 = math.exp %53 : vector<64x64xf32>
    %cst_21 = arith.constant dense<0.000000e+00> : vector<64xf32>
    %55 = vector.multi_reduction <add>, %54, %cst_21 [1] : vector<64x64xf32> to vector<64xf32>
    %56 = vector.shape_cast %55 : vector<64xf32> to vector<64x1xf32>
    %57 = tpu.reciprocal %56 {approx = true} : vector<64x1xf32> -> vector<64x1xf32>
    %58 = vector.broadcast %57 : vector<64x1xf32> to vector<64x64xf32>
    %59 = arith.mulf %54, %58 : vector<64x64xf32>
    %60 = arith.truncf %59 : vector<64x64xf32> to vector<64x64xbf16>
    %61 = arith.truncf %45 : vector<64x32xf32> to vector<64x32xbf16>
    %cst_22 = arith.constant dense<0.000000e+00> : vector<64x32xf32>
    %62 = tpu.matmul %60, %61, %cst_22 {dimension_numbers = #tpu.dot_dimension_numbers<[1], [0], [0], [1], [0, 0, 1, 1], [], []>} : vector<64x64xbf16>, vector<64x32xbf16>, vector<64x32xf32> -> vector<64x32xf32>
    %63 = vector.extract_strided_slice %62 {offsets = [0, 0], sizes = [16, 32], strides = [1, 1]} : vector<64x32xf32> to vector<16x32xf32>
    %64 = vector.extract_strided_slice %62 {offsets = [16, 0], sizes = [16, 32], strides = [1, 1]} : vector<64x32xf32> to vector<16x32xf32>
    %65 = arith.addf %63, %64 : vector<16x32xf32>
    %66 = vector.extract_strided_slice %62 {offsets = [32, 0], sizes = [16, 32], strides = [1, 1]} : vector<64x32xf32> to vector<16x32xf32>
    %67 = arith.addf %65, %66 : vector<16x32xf32>
    %68 = vector.extract_strided_slice %62 {offsets = [48, 0], sizes = [16, 32], strides = [1, 1]} : vector<64x32xf32> to vector<16x32xf32>
    %69 = arith.addf %67, %68 : vector<16x32xf32>
    %70 = vector.broadcast %25 : vector<1x32xf32> to vector<16x32xf32>
    %71 = arith.addf %69, %70 : vector<16x32xf32>
    %72 = arith.addf %20, %71 : vector<16x32xf32>
    %cst_23 = arith.constant dense<0.000000e+00> : vector<16xf32>
    %73 = vector.multi_reduction <add>, %72, %cst_23 [1] : vector<16x32xf32> to vector<16xf32>
    %74 = vector.shape_cast %73 : vector<16xf32> to vector<16x1xf32>
    %cst_24 = arith.constant 3.200000e+01 : f32
    %75 = vector.broadcast %cst_24 : f32 to vector<16x1xf32>
    %76 = arith.divf %74, %75 : vector<16x1xf32>
    %77 = vector.broadcast %76 : vector<16x1xf32> to vector<16x32xf32>
    %78 = arith.subf %72, %77 : vector<16x32xf32>
    %79 = arith.mulf %78, %78 : vector<16x32xf32>
    %cst_25 = arith.constant dense<0.000000e+00> : vector<16xf32>
    %80 = vector.multi_reduction <add>, %79, %cst_25 [1] : vector<16x32xf32> to vector<16xf32>
    %81 = vector.shape_cast %80 : vector<16xf32> to vector<16x1xf32>
    %cst_26 = arith.constant 3.200000e+01 : f32
    %82 = vector.broadcast %cst_26 : f32 to vector<16x1xf32>
    %83 = arith.divf %81, %82 : vector<16x1xf32>
    %84 = vector.broadcast %76 : vector<16x1xf32> to vector<16x32xf32>
    %85 = arith.subf %72, %84 : vector<16x32xf32>
    %cst_27 = arith.constant 9.99999974E-6 : f32
    %86 = vector.broadcast %cst_27 : f32 to vector<16x1xf32>
    %87 = arith.addf %83, %86 : vector<16x1xf32>
    %88 = math.rsqrt %87 : vector<16x1xf32>
    %89 = vector.broadcast %88 : vector<16x1xf32> to vector<16x32xf32>
    %90 = arith.mulf %85, %89 : vector<16x32xf32>
    %91 = vector.broadcast %26 : vector<1x32xf32> to vector<16x32xf32>
    %92 = arith.mulf %90, %91 : vector<16x32xf32>
    %93 = vector.broadcast %27 : vector<1x32xf32> to vector<16x32xf32>
    %94 = arith.addf %92, %93 : vector<16x32xf32>
    %95 = arith.truncf %94 : vector<16x32xf32> to vector<16x32xbf16>
    %c384 = arith.constant 384 : index
    %c0_28 = arith.constant 0 : index
    %96 = vector.load %arg1[%c384, %c0_28] : memref<1008x128xbf16, #tpu.memory_space<vmem>>, vector<32x64xbf16>
    %cst_29 = arith.constant dense<0.000000e+00> : vector<16x64xf32>
    %97 = tpu.matmul %95, %96, %cst_29 {dimension_numbers = #tpu.dot_dimension_numbers<[1], [0], [0], [1], [0, 0, 1, 1], [], []>} : vector<16x32xbf16>, vector<32x64xbf16>, vector<16x64xf32> -> vector<16x64xf32>
    %98 = vector.broadcast %28 : vector<1x64xf32> to vector<16x64xf32>
    %99 = arith.addf %97, %98 : vector<16x64xf32>
    %cst_30 = arith.constant 0.000000e+00 : f32
    %100 = vector.broadcast %cst_30 : f32 to vector<16x64xf32>
    %101 = arith.maximumf %99, %100 : vector<16x64xf32>
    %102 = arith.truncf %101 : vector<16x64xf32> to vector<16x64xbf16>
    %c416 = arith.constant 416 : index
    %c0_31 = arith.constant 0 : index
    %103 = vector.load %arg1[%c416, %c0_31] : memref<1008x128xbf16, #tpu.memory_space<vmem>>, vector<64x32xbf16>
    %cst_32 = arith.constant dense<0.000000e+00> : vector<16x32xf32>
    %104 = tpu.matmul %102, %103, %cst_32 {dimension_numbers = #tpu.dot_dimension_numbers<[1], [0], [0], [1], [0, 0, 1, 1], [], []>} : vector<16x64xbf16>, vector<64x32xbf16>, vector<16x32xf32> -> vector<16x32xf32>
    %105 = vector.broadcast %29 : vector<1x32xf32> to vector<16x32xf32>
    %106 = arith.addf %104, %105 : vector<16x32xf32>
    %107 = arith.addf %94, %106 : vector<16x32xf32>
    %cst_33 = arith.constant dense<0.000000e+00> : vector<16xf32>
    %108 = vector.multi_reduction <add>, %107, %cst_33 [1] : vector<16x32xf32> to vector<16xf32>
    %109 = vector.shape_cast %108 : vector<16xf32> to vector<16x1xf32>
    %cst_34 = arith.constant 3.200000e+01 : f32
    %110 = vector.broadcast %cst_34 : f32 to vector<16x1xf32>
    %111 = arith.divf %109, %110 : vector<16x1xf32>
    %112 = vector.broadcast %111 : vector<16x1xf32> to vector<16x32xf32>
    %113 = arith.subf %107, %112 : vector<16x32xf32>
    %114 = arith.mulf %113, %113 : vector<16x32xf32>
    %cst_35 = arith.constant dense<0.000000e+00> : vector<16xf32>
    %115 = vector.multi_reduction <add>, %114, %cst_35 [1] : vector<16x32xf32> to vector<16xf32>
    %116 = vector.shape_cast %115 : vector<16xf32> to vector<16x1xf32>
    %cst_36 = arith.constant 3.200000e+01 : f32
    %117 = vector.broadcast %cst_36 : f32 to vector<16x1xf32>
    %118 = arith.divf %116, %117 : vector<16x1xf32>
    %119 = vector.broadcast %111 : vector<16x1xf32> to vector<16x32xf32>
    %120 = arith.subf %107, %119 : vector<16x32xf32>
    %cst_37 = arith.constant 9.99999974E-6 : f32
    %121 = vector.broadcast %cst_37 : f32 to vector<16x1xf32>
    %122 = arith.addf %118, %121 : vector<16x1xf32>
    %123 = math.rsqrt %122 : vector<16x1xf32>
    %124 = vector.broadcast %123 : vector<16x1xf32> to vector<16x32xf32>
    %125 = arith.mulf %120, %124 : vector<16x32xf32>
    %126 = vector.broadcast %30 : vector<1x32xf32> to vector<16x32xf32>
    %127 = arith.mulf %125, %126 : vector<16x32xf32>
    %128 = vector.broadcast %31 : vector<1x32xf32> to vector<16x32xf32>
    %129 = arith.addf %127, %128 : vector<16x32xf32>
    %c136 = arith.constant 136 : index
    %c0_38 = arith.constant 0 : index
    %130 = vector.load %arg2[%c136, %c0_38] : memref<280x128xf32, #tpu.memory_space<vmem>>, vector<64x8xf32>
    %c200 = arith.constant 200 : index
    %c0_39 = arith.constant 0 : index
    %131 = vector.load %arg2[%c200, %c0_39] : memref<280x128xf32, #tpu.memory_space<vmem>>, vector<64x8xf32>
    %c264 = arith.constant 264 : index
    %c0_40 = arith.constant 0 : index
    %132 = vector.load %arg2[%c264, %c0_40] : memref<280x128xf32, #tpu.memory_space<vmem>>, vector<8x128xf32>
    %133 = vector.extract_strided_slice %132 {offsets = [0, 0], sizes = [1, 32], strides = [1, 1]} : vector<8x128xf32> to vector<1x32xf32>
    %134 = vector.extract_strided_slice %132 {offsets = [1, 0], sizes = [1, 32], strides = [1, 1]} : vector<8x128xf32> to vector<1x32xf32>
    %135 = vector.extract_strided_slice %132 {offsets = [2, 0], sizes = [1, 32], strides = [1, 1]} : vector<8x128xf32> to vector<1x32xf32>
    %136 = vector.extract_strided_slice %132 {offsets = [3, 0], sizes = [1, 64], strides = [1, 1]} : vector<8x128xf32> to vector<1x64xf32>
    %137 = vector.extract_strided_slice %132 {offsets = [4, 0], sizes = [1, 32], strides = [1, 1]} : vector<8x128xf32> to vector<1x32xf32>
    %138 = vector.extract_strided_slice %132 {offsets = [5, 0], sizes = [1, 32], strides = [1, 1]} : vector<8x128xf32> to vector<1x32xf32>
    %139 = vector.extract_strided_slice %132 {offsets = [6, 0], sizes = [1, 32], strides = [1, 1]} : vector<8x128xf32> to vector<1x32xf32>
    %140 = tpu.concatenate %129, %21, %21, %21 in 1 : vector<16x32xf32>, vector<16x32xf32>, vector<16x32xf32>, vector<16x32xf32> -> vector<16x128xf32>
    %141 = tpu.concatenate %21, %129, %21, %21 in 1 : vector<16x32xf32>, vector<16x32xf32>, vector<16x32xf32>, vector<16x32xf32> -> vector<16x128xf32>
    %142 = tpu.concatenate %21, %21, %129, %21 in 1 : vector<16x32xf32>, vector<16x32xf32>, vector<16x32xf32>, vector<16x32xf32> -> vector<16x128xf32>
    %143 = tpu.concatenate %21, %21, %21, %129 in 1 : vector<16x32xf32>, vector<16x32xf32>, vector<16x32xf32>, vector<16x32xf32> -> vector<16x128xf32>
    %144 = tpu.concatenate %140, %141, %142, %143 in 0 : vector<16x128xf32>, vector<16x128xf32>, vector<16x128xf32>, vector<16x128xf32> -> vector<64x128xf32>
    %145 = arith.truncf %144 : vector<64x128xf32> to vector<64x128xbf16>
    %c480 = arith.constant 480 : index
    %c0_41 = arith.constant 0 : index
    %146 = vector.load %arg1[%c480, %c0_41] : memref<1008x128xbf16, #tpu.memory_space<vmem>>, vector<128x8xbf16>
    %cst_42 = arith.constant dense<0.000000e+00> : vector<64x8xf32>
    %147 = tpu.matmul %145, %146, %cst_42 {dimension_numbers = #tpu.dot_dimension_numbers<[1], [0], [0], [1], [0, 0, 1, 1], [], []>} : vector<64x128xbf16>, vector<128x8xbf16>, vector<64x8xf32> -> vector<64x8xf32>
    %148 = arith.addf %147, %130 : vector<64x8xf32>
    %c608 = arith.constant 608 : index
    %c0_43 = arith.constant 0 : index
    %149 = vector.load %arg1[%c608, %c0_43] : memref<1008x128xbf16, #tpu.memory_space<vmem>>, vector<128x8xbf16>
    %cst_44 = arith.constant dense<0.000000e+00> : vector<64x8xf32>
    %150 = tpu.matmul %145, %149, %cst_44 {dimension_numbers = #tpu.dot_dimension_numbers<[1], [0], [0], [1], [0, 0, 1, 1], [], []>} : vector<64x128xbf16>, vector<128x8xbf16>, vector<64x8xf32> -> vector<64x8xf32>
    %151 = arith.addf %150, %131 : vector<64x8xf32>
    %c736 = arith.constant 736 : index
    %c0_45 = arith.constant 0 : index
    %152 = vector.load %arg1[%c736, %c0_45] : memref<1008x128xbf16, #tpu.memory_space<vmem>>, vector<128x32xbf16>
    %cst_46 = arith.constant dense<0.000000e+00> : vector<64x32xf32>
    %153 = tpu.matmul %145, %152, %cst_46 {dimension_numbers = #tpu.dot_dimension_numbers<[1], [0], [0], [1], [0, 0, 1, 1], [], []>} : vector<64x128xbf16>, vector<128x32xbf16>, vector<64x32xf32> -> vector<64x32xf32>
    %154 = arith.truncf %148 : vector<64x8xf32> to vector<64x8xbf16>
    %155 = arith.truncf %151 : vector<64x8xf32> to vector<64x8xbf16>
    %cst_47 = arith.constant dense<0.000000e+00> : vector<64x64xf32>
    %156 = tpu.matmul %154, %155, %cst_47 {dimension_numbers = #tpu.dot_dimension_numbers<[1], [1], [0], [0], [0, 0, 1, 0], [], []>} : vector<64x8xbf16>, vector<64x8xbf16>, vector<64x64xf32> -> vector<64x64xf32>
    %157 = arith.addf %156, %14 : vector<64x64xf32>
    %cst_48 = arith.constant dense<0xFF800000> : vector<64xf32>
    %158 = vector.multi_reduction <maximumf>, %157, %cst_48 [1] : vector<64x64xf32> to vector<64xf32>
    %159 = vector.shape_cast %158 : vector<64xf32> to vector<64x1xf32>
    %160 = vector.broadcast %159 : vector<64x1xf32> to vector<64x64xf32>
    %161 = arith.subf %157, %160 : vector<64x64xf32>
    %162 = math.exp %161 : vector<64x64xf32>
    %cst_49 = arith.constant dense<0.000000e+00> : vector<64xf32>
    %163 = vector.multi_reduction <add>, %162, %cst_49 [1] : vector<64x64xf32> to vector<64xf32>
    %164 = vector.shape_cast %163 : vector<64xf32> to vector<64x1xf32>
    %165 = tpu.reciprocal %164 {approx = true} : vector<64x1xf32> -> vector<64x1xf32>
    %166 = vector.broadcast %165 : vector<64x1xf32> to vector<64x64xf32>
    %167 = arith.mulf %162, %166 : vector<64x64xf32>
    %168 = arith.truncf %167 : vector<64x64xf32> to vector<64x64xbf16>
    %169 = arith.truncf %153 : vector<64x32xf32> to vector<64x32xbf16>
    %cst_50 = arith.constant dense<0.000000e+00> : vector<64x32xf32>
    %170 = tpu.matmul %168, %169, %cst_50 {dimension_numbers = #tpu.dot_dimension_numbers<[1], [0], [0], [1], [0, 0, 1, 1], [], []>} : vector<64x64xbf16>, vector<64x32xbf16>, vector<64x32xf32> -> vector<64x32xf32>
    %171 = vector.extract_strided_slice %170 {offsets = [0, 0], sizes = [16, 32], strides = [1, 1]} : vector<64x32xf32> to vector<16x32xf32>
    %172 = vector.extract_strided_slice %170 {offsets = [16, 0], sizes = [16, 32], strides = [1, 1]} : vector<64x32xf32> to vector<16x32xf32>
    %173 = arith.addf %171, %172 : vector<16x32xf32>
    %174 = vector.extract_strided_slice %170 {offsets = [32, 0], sizes = [16, 32], strides = [1, 1]} : vector<64x32xf32> to vector<16x32xf32>
    %175 = arith.addf %173, %174 : vector<16x32xf32>
    %176 = vector.extract_strided_slice %170 {offsets = [48, 0], sizes = [16, 32], strides = [1, 1]} : vector<64x32xf32> to vector<16x32xf32>
    %177 = arith.addf %175, %176 : vector<16x32xf32>
    %178 = vector.broadcast %133 : vector<1x32xf32> to vector<16x32xf32>
    %179 = arith.addf %177, %178 : vector<16x32xf32>
    %180 = arith.addf %129, %179 : vector<16x32xf32>
    %cst_51 = arith.constant dense<0.000000e+00> : vector<16xf32>
    %181 = vector.multi_reduction <add>, %180, %cst_51 [1] : vector<16x32xf32> to vector<16xf32>
    %182 = vector.shape_cast %181 : vector<16xf32> to vector<16x1xf32>
    %cst_52 = arith.constant 3.200000e+01 : f32
    %183 = vector.broadcast %cst_52 : f32 to vector<16x1xf32>
    %184 = arith.divf %182, %183 : vector<16x1xf32>
    %185 = vector.broadcast %184 : vector<16x1xf32> to vector<16x32xf32>
    %186 = arith.subf %180, %185 : vector<16x32xf32>
    %187 = arith.mulf %186, %186 : vector<16x32xf32>
    %cst_53 = arith.constant dense<0.000000e+00> : vector<16xf32>
    %188 = vector.multi_reduction <add>, %187, %cst_53 [1] : vector<16x32xf32> to vector<16xf32>
    %189 = vector.shape_cast %188 : vector<16xf32> to vector<16x1xf32>
    %cst_54 = arith.constant 3.200000e+01 : f32
    %190 = vector.broadcast %cst_54 : f32 to vector<16x1xf32>
    %191 = arith.divf %189, %190 : vector<16x1xf32>
    %192 = vector.broadcast %184 : vector<16x1xf32> to vector<16x32xf32>
    %193 = arith.subf %180, %192 : vector<16x32xf32>
    %cst_55 = arith.constant 9.99999974E-6 : f32
    %194 = vector.broadcast %cst_55 : f32 to vector<16x1xf32>
    %195 = arith.addf %191, %194 : vector<16x1xf32>
    %196 = math.rsqrt %195 : vector<16x1xf32>
    %197 = vector.broadcast %196 : vector<16x1xf32> to vector<16x32xf32>
    %198 = arith.mulf %193, %197 : vector<16x32xf32>
    %199 = vector.broadcast %134 : vector<1x32xf32> to vector<16x32xf32>
    %200 = arith.mulf %198, %199 : vector<16x32xf32>
    %201 = vector.broadcast %135 : vector<1x32xf32> to vector<16x32xf32>
    %202 = arith.addf %200, %201 : vector<16x32xf32>
    %203 = arith.truncf %202 : vector<16x32xf32> to vector<16x32xbf16>
    %c864 = arith.constant 864 : index
    %c0_56 = arith.constant 0 : index
    %204 = vector.load %arg1[%c864, %c0_56] : memref<1008x128xbf16, #tpu.memory_space<vmem>>, vector<32x64xbf16>
    %cst_57 = arith.constant dense<0.000000e+00> : vector<16x64xf32>
    %205 = tpu.matmul %203, %204, %cst_57 {dimension_numbers = #tpu.dot_dimension_numbers<[1], [0], [0], [1], [0, 0, 1, 1], [], []>} : vector<16x32xbf16>, vector<32x64xbf16>, vector<16x64xf32> -> vector<16x64xf32>
    %206 = vector.broadcast %136 : vector<1x64xf32> to vector<16x64xf32>
    %207 = arith.addf %205, %206 : vector<16x64xf32>
    %cst_58 = arith.constant 0.000000e+00 : f32
    %208 = vector.broadcast %cst_58 : f32 to vector<16x64xf32>
    %209 = arith.maximumf %207, %208 : vector<16x64xf32>
    %210 = arith.truncf %209 : vector<16x64xf32> to vector<16x64xbf16>
    %c896 = arith.constant 896 : index
    %c0_59 = arith.constant 0 : index
    %211 = vector.load %arg1[%c896, %c0_59] : memref<1008x128xbf16, #tpu.memory_space<vmem>>, vector<64x32xbf16>
    %cst_60 = arith.constant dense<0.000000e+00> : vector<16x32xf32>
    %212 = tpu.matmul %210, %211, %cst_60 {dimension_numbers = #tpu.dot_dimension_numbers<[1], [0], [0], [1], [0, 0, 1, 1], [], []>} : vector<16x64xbf16>, vector<64x32xbf16>, vector<16x32xf32> -> vector<16x32xf32>
    %213 = vector.broadcast %137 : vector<1x32xf32> to vector<16x32xf32>
    %214 = arith.addf %212, %213 : vector<16x32xf32>
    %215 = arith.addf %202, %214 : vector<16x32xf32>
    %cst_61 = arith.constant dense<0.000000e+00> : vector<16xf32>
    %216 = vector.multi_reduction <add>, %215, %cst_61 [1] : vector<16x32xf32> to vector<16xf32>
    %217 = vector.shape_cast %216 : vector<16xf32> to vector<16x1xf32>
    %cst_62 = arith.constant 3.200000e+01 : f32
    %218 = vector.broadcast %cst_62 : f32 to vector<16x1xf32>
    %219 = arith.divf %217, %218 : vector<16x1xf32>
    %220 = vector.broadcast %219 : vector<16x1xf32> to vector<16x32xf32>
    %221 = arith.subf %215, %220 : vector<16x32xf32>
    %222 = arith.mulf %221, %221 : vector<16x32xf32>
    %cst_63 = arith.constant dense<0.000000e+00> : vector<16xf32>
    %223 = vector.multi_reduction <add>, %222, %cst_63 [1] : vector<16x32xf32> to vector<16xf32>
    %224 = vector.shape_cast %223 : vector<16xf32> to vector<16x1xf32>
    %cst_64 = arith.constant 3.200000e+01 : f32
    %225 = vector.broadcast %cst_64 : f32 to vector<16x1xf32>
    %226 = arith.divf %224, %225 : vector<16x1xf32>
    %227 = vector.broadcast %219 : vector<16x1xf32> to vector<16x32xf32>
    %228 = arith.subf %215, %227 : vector<16x32xf32>
    %cst_65 = arith.constant 9.99999974E-6 : f32
    %229 = vector.broadcast %cst_65 : f32 to vector<16x1xf32>
    %230 = arith.addf %226, %229 : vector<16x1xf32>
    %231 = math.rsqrt %230 : vector<16x1xf32>
    %232 = vector.broadcast %231 : vector<16x1xf32> to vector<16x32xf32>
    %233 = arith.mulf %228, %232 : vector<16x32xf32>
    %234 = vector.broadcast %138 : vector<1x32xf32> to vector<16x32xf32>
    %235 = arith.mulf %233, %234 : vector<16x32xf32>
    %236 = vector.broadcast %139 : vector<1x32xf32> to vector<16x32xf32>
    %237 = arith.addf %235, %236 : vector<16x32xf32>
    %238 = arith.truncf %237 : vector<16x32xf32> to vector<16x32xbf16>
    %c976 = arith.constant 976 : index
    %c0_66 = arith.constant 0 : index
    %239 = vector.load %arg1[%c976, %c0_66] : memref<1008x128xbf16, #tpu.memory_space<vmem>>, vector<32x16xbf16>
    %cst_67 = arith.constant dense<0.000000e+00> : vector<16x16xf32>
    %240 = tpu.matmul %238, %239, %cst_67 {dimension_numbers = #tpu.dot_dimension_numbers<[1], [0], [0], [1], [0, 0, 1, 1], [], []>} : vector<16x32xbf16>, vector<32x16xbf16>, vector<16x16xf32> -> vector<16x16xf32>
    %241 = vector.broadcast %2 : vector<1x16xf32> to vector<16x16xf32>
    %242 = arith.addf %240, %241 : vector<16x16xf32>
    %cst_68 = arith.constant 0.000000e+00 : f32
    %243 = vector.broadcast %cst_68 : f32 to vector<16x16xf32>
    %244 = arith.maximumf %242, %243 : vector<16x16xf32>
    %245 = vector.broadcast %3 : vector<1x16xf32> to vector<16x16xf32>
    %246 = arith.mulf %244, %245 : vector<16x16xf32>
    %cst_69 = arith.constant dense<0.000000e+00> : vector<16xf32>
    %247 = vector.multi_reduction <add>, %246, %cst_69 [1] : vector<16x16xf32> to vector<16xf32>
    %248 = vector.shape_cast %247 : vector<16xf32> to vector<16x1xf32>
    %249 = vector.broadcast %4 : vector<1x1xf32> to vector<16x1xf32>
    %250 = arith.addf %248, %249 : vector<16x1xf32>
    %251 = vector.shape_cast %250 : vector<16x1xf32> to vector<16x1xf32>
    %252 = vector.broadcast %251 : vector<16x1xf32> to vector<16x128xf32>
    %c0_70 = arith.constant 0 : index
    %c0_71 = arith.constant 0 : index
    %253 = vector.load %arg3[%c0_70, %c0_71] : memref<16x128xf32, #tpu.memory_space<vmem>>, vector<16x128xf32>
    tpu.vector_store %arg3[%c0_70, %c0_71], %252 {strides = array<i32>} : memref<16x128xf32, #tpu.memory_space<vmem>>, vector<16x128xf32>,
    return
  }
}

</mosaic_0001>

<llo_original>
// kernel: tpu_custom_call.1
$region0: #{tpu_custom_call.1}
  #allocation0 [shape = 'u32[]', space=smem, size = 0x4, offset = 0x4, fixed_abs, tag = 'smem constant byte address 0x4 - core index']
  #allocation1 [shape = 'u32[144,128]{1,0:T(1,128)}', space=vmem, size = 0x12000, scoped, tag = 'internal scratch']
  %s0 = inlined_call_operand.hbm [shape: f32[16,16], index: 0, kind: input, shape index: {}]
  %s1 = inlined_call_operand.hbm [shape: bf16[1008,128], index: 1, kind: input, shape index: {}]
  %s2 = inlined_call_operand.hbm [shape: f32[280,128], index: 2, kind: input, shape index: {}]
  %s3 = inlined_call_operand.hbm [shape: f32[16,128], index: 3, kind: output, shape index: {}]
  %s4 = sld [smem:[#allocation0]]
  $region34: #{tpu_custom_call.1} parent=0
    _
  %s6 = ssub.s32 1, %s4
  %s7 = scalar_select 0, %s6, %s4
  $region1: #{tpu_custom_call.1} parent=0
    #allocation2 [shape = 'u8[8192]{0}', space=vmem, size = 0x2000, scoped, tag = 'input window, operand 0, single buffered']
    #allocation3 [shape = 's32[1]{0}', space=sflag, size = 0x4, scoped, tag = 'scoped memory for tpu_custom_call.1']
    #allocation4 [shape = 's32[1]{0}', space=sflag, size = 0x4, scoped, tag = 'scoped memory for tpu_custom_call.1']
    #allocation5 [shape = 'u8[258048]{0}', space=vmem, size = 0x3f000, scoped, tag = 'input window, operand 1, single buffered']
    #allocation6 [shape = 's32[1]{0}', space=sflag, size = 0x4, scoped, tag = 'scoped memory for tpu_custom_call.1']
    #allocation7 [shape = 'u8[143360]{0}', space=vmem, size = 0x23000, scoped, tag = 'input window, operand 2, single buffered']
    #allocation8 [shape = 'u8[8192]{0}', space=vmem, size = 0x2000, scoped, tag = 'output window, operand 0, single buffered']
    %8 = vsyncpa [#allocation3], 0
    %9 = vsyncpa [#allocation6], 0
    %10 = vsyncpa [#allocation4], 0
    // Predicated region
    $region2: #{tpu_custom_call.1} parent=1 // pred_check
      _
    $region3: #{tpu_custom_call.1} parent=1 // pred_check_branch
      %12 = sbr.rel (0) target = $region5
    $region4: #{tpu_custom_call.1} parent=1 // pred_region
      %s14 = ssub.s32 256, 256
      %15 = vsyncadd [#allocation3], %s14
      %s16 = sshll.u32 [#allocation2], 4
      %s17 = int_to_ptr.vmem [resolvable:$true] %s16
      %22 = dma.hbm_to_vmem [thread:$0]  %s0, 256, %s17, [#allocation3], 128, 128, 8
    $region5: #{tpu_custom_call.1} parent=1 // pred_fallthru
      _
    // Predicated region
    $region6: #{tpu_custom_call.1} parent=1 // pred_check
      _
    $region7: #{tpu_custom_call.1} parent=1 // pred_check_branch
      %24 = sbr.rel (0) target = $region9
    $region8: #{tpu_custom_call.1} parent=1 // pred_region
      %s26 = ssub.s32 8064, 8064
      %27 = vsyncadd [#allocation6], %s26
      %s28 = sshll.u32 [#allocation5], 4
      %s29 = int_to_ptr.vmem [resolvable:$true] %s28
      %34 = dma.hbm_to_vmem [thread:$0]  %s1, 8064, %s29, [#allocation6], 64, 64, 4
    $region9: #{tpu_custom_call.1} parent=1 // pred_fallthru
      _
    // Predicated region
    $region10: #{tpu_custom_call.1} parent=1 // pred_check
      _
    $region11: #{tpu_custom_call.1} parent=1 // pred_check_branch
      %36 = sbr.rel (0) target = $region13
    $region12: #{tpu_custom_call.1} parent=1 // pred_region
      %s38 = ssub.s32 4480, 4480
      %39 = vsyncadd [#allocation6], %s38
      %s40 = sshll.u32 [#allocation7], 4
      %s41 = int_to_ptr.vmem [resolvable:$true] %s40
      %46 = dma.hbm_to_vmem [thread:$0]  %s2, 4480, %s41, [#allocation6], 128, 128, 8
    $region13: #{tpu_custom_call.1} parent=1 // pred_fallthru
      _
    // Predicated region
    $region14: #{tpu_custom_call.1} parent=1 // pred_check
      _
    $region15: #{tpu_custom_call.1} parent=1 // pred_check_branch
      %48 = sbr.rel (0) target = $region17
    $region16: #{tpu_custom_call.1} parent=1 // pred_region
      %49 = dma.done [#allocation3], 256
    $region17: #{tpu_custom_call.1} parent=1 // pred_fallthru
      _
    // Predicated region
    $region18: #{tpu_custom_call.1} parent=1 // pred_check
      _
    $region19: #{tpu_custom_call.1} parent=1 // pred_check_branch
      %51 = sbr.rel (0) target = $region21
    $region20: #{tpu_custom_call.1} parent=1 // pred_region
      %52 = dma.done [#allocation6], 8064
    $region21: #{tpu_custom_call.1} parent=1 // pred_fallthru
      _
    // Predicated region
    $region22: #{tpu_custom_call.1} parent=1 // pred_check
      _
    $region23: #{tpu_custom_call.1} parent=1 // pred_check_branch
      %54 = sbr.rel (0) target = $region25
    $region24: #{tpu_custom_call.1} parent=1 // pred_region
      %55 = dma.done [#allocation6], 4480
    $region25: #{tpu_custom_call.1} parent=1 // pred_fallthru
      _
    %v57 = vld [vmem:[#allocation7 + $0x110] sm:$0xff]
    %v58 = vlaneseq
    %v59 = vshrl.u32 %v58, 7
    %v60 = vadd.s32 %v59, 8
    %v61 = vadd.s32 %v59, 16
    %v62 = vadd.s32 %v59, 24
    %v63 = vadd.s32 %v59, 32
    %v64 = vadd.s32 %v59, 40
    %v65 = vadd.s32 %v59, 48
    %v66 = vadd.s32 %v59, 56
    %v67 = vlaneseq
    %v68 = vand.u32 %v67, 127
    %v69 = vshra.s32 %v59, 3
    %v70 = vshra.s32 %v60, 3
    %v71 = vshra.s32 %v61, 3
    %v72 = vshra.s32 %v62, 3
    %v73 = vshra.s32 %v63, 3
    %v74 = vshra.s32 %v64, 3
    %v75 = vshra.s32 %v65, 3
    %v76 = vshra.s32 %v66, 3
    %v77 = vshra.s32 %v68, 3
    %vm78 = vcmp.eq.s32.totalorder %v69, %v77
    %vm79 = vcmp.eq.s32.totalorder %v70, %v77
    %vm80 = vcmp.eq.s32.totalorder %v71, %v77
    %vm81 = vcmp.eq.s32.totalorder %v72, %v77
    %vm82 = vcmp.eq.s32.totalorder %v73, %v77
    %vm83 = vcmp.eq.s32.totalorder %v74, %v77
    %vm84 = vcmp.eq.s32.totalorder %v75, %v77
    %vm85 = vcmp.eq.s32.totalorder %v76, %v77
    %v86 = vsel %vm78, 0.0, -1e+30
    %v87 = vsel %vm79, 0.0, -1e+30
    %v88 = vsel %vm80, 0.0, -1e+30
    %v89 = vsel %vm81, 0.0, -1e+30
    %v90 = vsel %vm82, 0.0, -1e+30
    %v91 = vsel %vm83, 0.0, -1e+30
    %v92 = vsel %vm84, 0.0, -1e+30
    %v93 = vsel %vm85, 0.0, -1e+30
    %v94 = vld [vmem:[#allocation2] sm:$0xff]
    %v95 = vld [vmem:[#allocation2 + $0x8] sm:$0xff]
    %v96 = vpack.c.bf16 %v95, %v94
    %v97 = vld [vmem:[#allocation5 + $0x1e0] sm:$0xf]
    %v98 = vld [vmem:[#allocation5 + $0x1e4] sm:$0xf]
    %v99 = vlaneseq
    %v100 = vshrl.u32 %v99, 7
    %v101 = vsub.s32 0, %v100
    %v102 = vrot.slane %v57, %v101
    %v105 = vunpack.c.l.b16 %v97
    %v106 = vunpack.c.l.b16 %v98
    %v107 = vpack.c.b16 %v106, %v105
    %vm109 = vcmask 130048
    %v111 = vsel %vm109, %v96, 0
    %113 = vmatprep.subr.bf16.mxu0 0
    %114 = vmatpush1.bf16.msra.mxu0 %v107
    %115 = vmatprep.subr.bf16.mxu0 0
    %116 = vmatpush1.bf16.msra.mxu0 0
    %117 = vmatprep.subr.bf16.mxu0 0
    %118 = vmatpush1.bf16.msra.mxu0 0
    %119 = vmatprep.subr.bf16.mxu0 0
    %120 = vmatpush1.bf16.msra.mxu0 0
    %121 = vmatprep.subr.bf16.mxu0 0
    %122 = vmatpush1.bf16.msra.mxu0 0
    %123 = vmatprep.subr.bf16.mxu0 0
    %124 = vmatpush1.bf16.msra.mxu0 0
    %125 = vmatprep.subr.bf16.mxu0 0
    %126 = vmatpush1.bf16.msra.mxu0 0
    %127 = vmatprep.subr.bf16.mxu0 0
    %128 = vmatpush1.bf16.msra.mxu0 0
    %129 = vmatprep.subr.bf16.mxu0 0
    %130 = vmatpush1.bf16.msra.mxu0 0
    %131 = vmatprep.subr.bf16.mxu0 0
    %132 = vmatpush1.bf16.msra.mxu0 0
    %133 = vmatprep.subr.bf16.mxu0 0
    %134 = vmatpush1.bf16.msra.mxu0 0
    %135 = vmatprep.subr.bf16.mxu0 0
    %136 = vmatpush1.bf16.msra.mxu0 0
    %137 = vmatprep.subr.bf16.mxu0 0
    %138 = vmatpush1.bf16.msra.mxu0 0
    %139 = vmatprep.subr.bf16.mxu0 0
    %140 = vmatpush1.bf16.msra.mxu0 0
    %141 = vmatprep.subr.bf16.mxu0 0
    %142 = vmatpush1.bf16.msra.mxu0 0
    %143 = vmatprep.subr.bf16.mxu0 0
    %144 = vmatpush1.bf16.msra.mxu0 0
    %145 = vmatprep.mubr.bf16.mxu0 0
    %146 = vmatmul.mubr.bf16.gmra.mrb[0].mxu0 %v111
    %v147 = vpop.f32.mrb[0].mxu0
    %v148 = vadd.f32 %v102, %v147
    %v149 = vpop.f32.mrb[0].mxu0
    %v150 = vpop.f32.mrb[0].mxu0
    %v151 = vadd.f32 %v102, %v150
    %v152 = vpop.f32.mrb[0].mxu0
    %153 = vdwg.mxu0
    %v154 = vld [vmem:[#allocation7] sm:$0xff]
    %v155 = vld [vmem:[#allocation7 + $0x8] sm:$0xff]
    %v156 = vld [vmem:[#allocation7 + $0x10] sm:$0xff]
    %v157 = vld [vmem:[#allocation7 + $0x18] sm:$0xff]
    %v158 = vld [vmem:[#allocation7 + $0x20] sm:$0xff]
    %v159 = vld [vmem:[#allocation7 + $0x28] sm:$0xff]
    %v160 = vld [vmem:[#allocation7 + $0x30] sm:$0xff]
    %v161 = vld [vmem:[#allocation7 + $0x38] sm:$0xff]
    %v162 = vld [vmem:[#allocation7 + $0x40] sm:$0xff]
    %v163 = vld [vmem:[#allocation7 + $0x48] sm:$0xff]
    %v164 = vld [vmem:[#allocation7 + $0x50] sm:$0xff]
    %v165 = vld [vmem:[#allocation7 + $0x58] sm:$0xff]
    %v166 = vld [vmem:[#allocation7 + $0x60] sm:$0xff]
    %v167 = vld [vmem:[#allocation7 + $0x68] sm:$0xff]
    %v168 = vld [vmem:[#allocation7 + $0x70] sm:$0xff]
    %v169 = vld [vmem:[#allocation7 + $0x78] sm:$0xff]
    %v170 = vld [vmem:[#allocation7 + $0x80] sm:$0xff]
    %vm171 = vcmask 261120
    %v172 = vsel %vm171, %v148, 0.0
    %v173 = vsel %vm171, %v151, 0.0
    %vm174 = vcmask 523264
    %v175 = vsel %vm174, %v172, 0.0
    %v176 = vsel %vm174, %v173, 0.0
    %vm177 = vcmask 785408
    %v178 = vsel %vm177, %v175, 0.0
    %v179 = vsel %vm177, %v176, 0.0
    %182 = vrot.lane.b32.xlu0 %v148, 32
    %v183 = vpop.permute.xlu0 %182
    %184 = vrot.lane.b32.xlu0 %v151, 32
    %v185 = vpop.permute.xlu0 %184
    %v188 = vsel %vm171, 0.0, %v183
    %v189 = vsel %vm171, 0.0, %v185
    %v190 = vsel %vm174, %v188, 0.0
    %v191 = vsel %vm174, %v189, 0.0
    %v192 = vsel %vm177, %v190, 0.0
    %v193 = vsel %vm177, %v191, 0.0
    %194 = vrot.lane.b32.xlu0 %v148, 64
    %v195 = vpop.permute.xlu0 %194
    %196 = vrot.lane.b32.xlu0 %v151, 64
    %v197 = vpop.permute.xlu0 %196
    %v200 = vsel %vm174, 0.0, %v195
    %v201 = vsel %vm174, 0.0, %v197
    %v202 = vsel %vm177, %v200, 0.0
    %v203 = vsel %vm177, %v201, 0.0
    %204 = vrot.lane.b32.xlu0 %v148, 96
    %v205 = vpop.permute.xlu0 %204
    %206 = vrot.lane.b32.xlu0 %v151, 96
    %v207 = vpop.permute.xlu0 %206
    %v210 = vsel %vm177, 0.0, %v205
    %v211 = vsel %vm177, 0.0, %v207
    %v212 = vpack.c.bf16 %v179, %v178
    %v213 = vpack.c.bf16 %v193, %v192
    %v214 = vpack.c.bf16 %v203, %v202
    %v215 = vpack.c.bf16 %v211, %v210
    %v216 = vld [vmem:[#allocation5] sm:$0xf]
    %v217 = vld [vmem:[#allocation5 + $0x4] sm:$0xf]
    %v218 = vld [vmem:[#allocation5 + $0x8] sm:$0xf]
    %v219 = vld [vmem:[#allocation5 + $0xc] sm:$0xf]
    %v220 = vld [vmem:[#allocation5 + $0x10] sm:$0xf]
    %v221 = vld [vmem:[#allocation5 + $0x14] sm:$0xf]
    %v222 = vld [vmem:[#allocation5 + $0x18] sm:$0xf]
    %v223 = vld [vmem:[#allocation5 + $0x1c] sm:$0xf]
    %v224 = vld [vmem:[#allocation5 + $0x20] sm:$0xf]
    %v225 = vld [vmem:[#allocation5 + $0x24] sm:$0xf]
    %v226 = vld [vmem:[#allocation5 + $0x28] sm:$0xf]
    %v227 = vld [vmem:[#allocation5 + $0x2c] sm:$0xf]
    %v228 = vld [vmem:[#allocation5 + $0x30] sm:$0xf]
    %v229 = vld [vmem:[#allocation5 + $0x34] sm:$0xf]
    %v230 = vld [vmem:[#allocation5 + $0x38] sm:$0xf]
    %v231 = vld [vmem:[#allocation5 + $0x3c] sm:$0xf]
    %v248 = vunpack.c.l.b16 %v216
    %v249 = vunpack.c.l.b16 %v217
    %v250 = vunpack.c.l.b16 %v218
    %v251 = vunpack.c.l.b16 %v219
    %v252 = vunpack.c.l.b16 %v220
    %v253 = vunpack.c.l.b16 %v221
    %v254 = vunpack.c.l.b16 %v222
    %v255 = vunpack.c.l.b16 %v223
    %v256 = vunpack.c.l.b16 %v224
    %v257 = vunpack.c.l.b16 %v225
    %v258 = vunpack.c.l.b16 %v226
    %v259 = vunpack.c.l.b16 %v227
    %v260 = vunpack.c.l.b16 %v228
    %v261 = vunpack.c.l.b16 %v229
    %v262 = vunpack.c.l.b16 %v230
    %v263 = vunpack.c.l.b16 %v231
    %v264 = vpack.c.b16 %v249, %v248
    %v265 = vpack.c.b16 %v251, %v250
    %v266 = vpack.c.b16 %v253, %v252
    %v267 = vpack.c.b16 %v255, %v254
    %v268 = vpack.c.b16 %v257, %v256
    %v269 = vpack.c.b16 %v259, %v258
    %v270 = vpack.c.b16 %v261, %v260
    %v271 = vpack.c.b16 %v263, %v262
    %280 = vmatprep.subr.bf16.mxu0 0
    %281 = vmatpush1.bf16.msra.mxu0 %v264
    %282 = vmatprep.subr.bf16.mxu0 0
    %283 = vmatpush1.bf16.msra.mxu0 %v265
    %284 = vmatprep.subr.bf16.mxu0 0
    %285 = vmatpush1.bf16.msra.mxu0 %v266
    %286 = vmatprep.subr.bf16.mxu0 0
    %287 = vmatpush1.bf16.msra.mxu0 %v267
    %288 = vmatprep.subr.bf16.mxu0 0
    %289 = vmatpush1.bf16.msra.mxu0 %v268
    %290 = vmatprep.subr.bf16.mxu0 0
    %291 = vmatpush1.bf16.msra.mxu0 %v269
    %292 = vmatprep.subr.bf16.mxu0 0
    %293 = vmatpush1.bf16.msra.mxu0 %v270
    %294 = vmatprep.subr.bf16.mxu0 0
    %295 = vmatpush1.bf16.msra.mxu0 %v271
    %296 = vmatprep.subr.bf16.mxu0 0
    %297 = vmatpush1.bf16.msra.mxu0 0
    %298 = vmatprep.subr.bf16.mxu0 0
    %299 = vmatpush1.bf16.msra.mxu0 0
    %300 = vmatprep.subr.bf16.mxu0 0
    %301 = vmatpush1.bf16.msra.mxu0 0
    %302 = vmatprep.subr.bf16.mxu0 0
    %303 = vmatpush1.bf16.msra.mxu0 0
    %304 = vmatprep.subr.bf16.mxu0 0
    %305 = vmatpush1.bf16.msra.mxu0 0
    %306 = vmatprep.subr.bf16.mxu0 0
    %307 = vmatpush1.bf16.msra.mxu0 0
    %308 = vmatprep.subr.bf16.mxu0 0
    %309 = vmatpush1.bf16.msra.mxu0 0
    %310 = vmatprep.subr.bf16.mxu0 0
    %311 = vmatpush1.bf16.msra.mxu0 0
    %312 = vmatprep.mubr.bf16.mxu0 0
    %313 = vmatmul.mubr.bf16.gmra.mrb[0].mxu0 %v212
    %v314 = vpop.f32.mrb[0].mxu0
    %v315 = vadd.f32 %v154, %v314
    %v316 = vpop.f32.mrb[0].mxu0
    %v317 = vpop.f32.mrb[0].mxu0
    %v318 = vadd.f32 %v155, %v317
    %v319 = vpop.f32.mrb[0].mxu0
    %320 = vmatprep.mubr.bf16.mxu0 0
    %321 = vmatmul.mubr.bf16.gmra.mrb[0].mxu0 %v213
    %v322 = vpop.f32.mrb[0].mxu0
    %v323 = vadd.f32 %v156, %v322
    %v324 = vpop.f32.mrb[0].mxu0
    %v325 = vpop.f32.mrb[0].mxu0
    %v326 = vadd.f32 %v157, %v325
    %v327 = vpop.f32.mrb[0].mxu0
    %328 = vmatprep.mubr.bf16.mxu0 0
    %329 = vmatmul.mubr.bf16.gmra.mrb[0].mxu0 %v214
    %v330 = vpop.f32.mrb[0].mxu0
    %v331 = vadd.f32 %v158, %v330
    %v332 = vpop.f32.mrb[0].mxu0
    %v333 = vpop.f32.mrb[0].mxu0
    %v334 = vadd.f32 %v159, %v333
    %v335 = vpop.f32.mrb[0].mxu0
    %336 = vmatprep.mubr.bf16.mxu0 0
    %337 = vmatmul.mubr.bf16.gmra.mrb[0].mxu0 %v215
    %v338 = vpop.f32.mrb[0].mxu0
    %v339 = vadd.f32 %v160, %v338
    %v340 = vpop.f32.mrb[0].mxu0
    %v341 = vpop.f32.mrb[0].mxu0
    %v342 = vadd.f32 %v161, %v341
    %v343 = vpop.f32.mrb[0].mxu0
    %344 = vdwg.mxu0
    %v345 = vld [vmem:[#allocation5 + $0x40] sm:$0xf]
    %v346 = vld [vmem:[#allocation5 + $0x44] sm:$0xf]
    %v347 = vld [vmem:[#allocation5 + $0x48] sm:$0xf]
    %v348 = vld [vmem:[#allocation5 + $0x4c] sm:$0xf]
    %v349 = vld [vmem:[#allocation5 + $0x50] sm:$0xf]
    %v350 = vld [vmem:[#allocation5 + $0x54] sm:$0xf]
    %v351 = vld [vmem:[#allocation5 + $0x58] sm:$0xf]
    %v352 = vld [vmem:[#allocation5 + $0x5c] sm:$0xf]
    %v353 = vld [vmem:[#allocation5 + $0x60] sm:$0xf]
    %v354 = vld [vmem:[#allocation5 + $0x64] sm:$0xf]
    %v355 = vld [vmem:[#allocation5 + $0x68] sm:$0xf]
    %v356 = vld [vmem:[#allocation5 + $0x6c] sm:$0xf]
    %v357 = vld [vmem:[#allocation5 + $0x70] sm:$0xf]
    %v358 = vld [vmem:[#allocation5 + $0x74] sm:$0xf]
    %v359 = vld [vmem:[#allocation5 + $0x78] sm:$0xf]
    %v360 = vld [vmem:[#allocation5 + $0x7c] sm:$0xf]
    %v377 = vunpack.c.l.b16 %v345
    %v378 = vunpack.c.l.b16 %v346
    %v379 = vunpack.c.l.b16 %v347
    %v380 = vunpack.c.l.b16 %v348
    %v381 = vunpack.c.l.b16 %v349
    %v382 = vunpack.c.l.b16 %v350
    %v383 = vunpack.c.l.b16 %v351
    %v384 = vunpack.c.l.b16 %v352
    %v385 = vunpack.c.l.b16 %v353
    %v386 = vunpack.c.l.b16 %v354
    %v387 = vunpack.c.l.b16 %v355
    %v388 = vunpack.c.l.b16 %v356
    %v389 = vunpack.c.l.b16 %v357
    %v390 = vunpack.c.l.b16 %v358
    %v391 = vunpack.c.l.b16 %v359
    %v392 = vunpack.c.l.b16 %v360
    %v393 = vpack.c.b16 %v378, %v377
    %v394 = vpack.c.b16 %v380, %v379
    %v395 = vpack.c.b16 %v382, %v381
    %v396 = vpack.c.b16 %v384, %v383
    %v397 = vpack.c.b16 %v386, %v385
    %v398 = vpack.c.b16 %v388, %v387
    %v399 = vpack.c.b16 %v390, %v389
    %v400 = vpack.c.b16 %v392, %v391
    %409 = vmatprep.subr.bf16.mxu0 0
    %410 = vmatpush1.bf16.msra.mxu0 %v393
    %411 = vmatprep.subr.bf16.mxu0 0
    %412 = vmatpush1.bf16.msra.mxu0 %v394
    %413 = vmatprep.subr.bf16.mxu0 0
    %414 = vmatpush1.bf16.msra.mxu0 %v395
    %415 = vmatprep.subr.bf16.mxu0 0
    %416 = vmatpush1.bf16.msra.mxu0 %v396
    %417 = vmatprep.subr.bf16.mxu0 0
    %418 = vmatpush1.bf16.msra.mxu0 %v397
    %419 = vmatprep.subr.bf16.mxu0 0
    %420 = vmatpush1.bf16.msra.mxu0 %v398
    %421 = vmatprep.subr.bf16.mxu0 0
    %422 = vmatpush1.bf16.msra.mxu0 %v399
    %423 = vmatprep.subr.bf16.mxu0 0
    %424 = vmatpush1.bf16.msra.mxu0 %v400
    %425 = vmatprep.subr.bf16.mxu0 0
    %426 = vmatpush1.bf16.msra.mxu0 0
    %427 = vmatprep.subr.bf16.mxu0 0
    %428 = vmatpush1.bf16.msra.mxu0 0
    %429 = vmatprep.subr.bf16.mxu0 0
    %430 = vmatpush1.bf16.msra.mxu0 0
    %431 = vmatprep.subr.bf16.mxu0 0
    %432 = vmatpush1.bf16.msra.mxu0 0
    %433 = vmatprep.subr.bf16.mxu0 0
    %434 = vmatpush1.bf16.msra.mxu0 0
    %435 = vmatprep.subr.bf16.mxu0 0
    %436 = vmatpush1.bf16.msra.mxu0 0
    %437 = vmatprep.subr.bf16.mxu0 0
    %438 = vmatpush1.bf16.msra.mxu0 0
    %439 = vmatprep.subr.bf16.mxu0 0
    %440 = vmatpush1.bf16.msra.mxu0 0
    %441 = vmatprep.mubr.bf16.mxu0 0
    %442 = vmatmul.mubr.bf16.gmra.mrb[0].mxu0 %v212
    %v443 = vpop.f32.mrb[0].mxu0
    %v444 = vadd.f32 %v162, %v443
    %v445 = vpop.f32.mrb[0].mxu0
    %v446 = vpop.f32.mrb[0].mxu0
    %v447 = vadd.f32 %v163, %v446
    %v448 = vpop.f32.mrb[0].mxu0
    %449 = vmatprep.mubr.bf16.mxu0 0
    %450 = vmatmul.mubr.bf16.gmra.mrb[0].mxu0 %v213
    %v451 = vpop.f32.mrb[0].mxu0
    %v452 = vadd.f32 %v164, %v451
    %v453 = vpop.f32.mrb[0].mxu0
    %v454 = vpop.f32.mrb[0].mxu0
    %v455 = vadd.f32 %v165, %v454
    %v456 = vpop.f32.mrb[0].mxu0
    %457 = vmatprep.mubr.bf16.mxu0 0
    %458 = vmatmul.mubr.bf16.gmra.mrb[0].mxu0 %v214
    %v459 = vpop.f32.mrb[0].mxu0
    %v460 = vadd.f32 %v166, %v459
    %v461 = vpop.f32.mrb[0].mxu0
    %v462 = vpop.f32.mrb[0].mxu0
    %v463 = vadd.f32 %v167, %v462
    %v464 = vpop.f32.mrb[0].mxu0
    %465 = vmatprep.mubr.bf16.mxu0 0
    %466 = vmatmul.mubr.bf16.gmra.mrb[0].mxu0 %v215
    %v467 = vpop.f32.mrb[0].mxu0
    %v468 = vadd.f32 %v168, %v467
    %v469 = vpop.f32.mrb[0].mxu0
    %v470 = vpop.f32.mrb[0].mxu0
    %v471 = vadd.f32 %v169, %v470
    %v472 = vpop.f32.mrb[0].mxu0
    %473 = vdwg.mxu0
    %v474 = vld [vmem:[#allocation5 + $0x80] sm:$0xf]
    %v475 = vld [vmem:[#allocation5 + $0x84] sm:$0xf]
    %v476 = vld [vmem:[#allocation5 + $0x88] sm:$0xf]
    %v477 = vld [vmem:[#allocation5 + $0x8c] sm:$0xf]
    %v478 = vld [vmem:[#allocation5 + $0x90] sm:$0xf]
    %v479 = vld [vmem:[#allocation5 + $0x94] sm:$0xf]
    %v480 = vld [vmem:[#allocation5 + $0x98] sm:$0xf]
    %v481 = vld [vmem:[#allocation5 + $0x9c] sm:$0xf]
    %v482 = vld [vmem:[#allocation5 + $0xa0] sm:$0xf]
    %v483 = vld [vmem:[#allocation5 + $0xa4] sm:$0xf]
    %v484 = vld [vmem:[#allocation5 + $0xa8] sm:$0xf]
    %v485 = vld [vmem:[#allocation5 + $0xac] sm:$0xf]
    %v486 = vld [vmem:[#allocation5 + $0xb0] sm:$0xf]
    %v487 = vld [vmem:[#allocation5 + $0xb4] sm:$0xf]
    %v488 = vld [vmem:[#allocation5 + $0xb8] sm:$0xf]
    %v489 = vld [vmem:[#allocation5 + $0xbc] sm:$0xf]
    %v506 = vunpack.c.l.b16 %v474
    %v507 = vunpack.c.l.b16 %v475
    %v508 = vunpack.c.l.b16 %v476
    %v509 = vunpack.c.l.b16 %v477
    %v510 = vunpack.c.l.b16 %v478
    %v511 = vunpack.c.l.b16 %v479
    %v512 = vunpack.c.l.b16 %v480
    %v513 = vunpack.c.l.b16 %v481
    %v514 = vunpack.c.l.b16 %v482
    %v515 = vunpack.c.l.b16 %v483
    %v516 = vunpack.c.l.b16 %v484
    %v517 = vunpack.c.l.b16 %v485
    %v518 = vunpack.c.l.b16 %v486
    %v519 = vunpack.c.l.b16 %v487
    %v520 = vunpack.c.l.b16 %v488
    %v521 = vunpack.c.l.b16 %v489
    %v522 = vpack.c.b16 %v507, %v506
    %v523 = vpack.c.b16 %v509, %v508
    %v524 = vpack.c.b16 %v511, %v510
    %v525 = vpack.c.b16 %v513, %v512
    %v526 = vpack.c.b16 %v515, %v514
    %v527 = vpack.c.b16 %v517, %v516
    %v528 = vpack.c.b16 %v519, %v518
    %v529 = vpack.c.b16 %v521, %v520
    %538 = vmatprep.subr.bf16.mxu0 0
    %539 = vmatpush1.bf16.msra.mxu0 %v522
    %540 = vmatprep.subr.bf16.mxu0 0
    %541 = vmatpush1.bf16.msra.mxu0 %v523
    %542 = vmatprep.subr.bf16.mxu0 0
    %543 = vmatpush1.bf16.msra.mxu0 %v524
    %544 = vmatprep.subr.bf16.mxu0 0
    %545 = vmatpush1.bf16.msra.mxu0 %v525
    %546 = vmatprep.subr.bf16.mxu0 0
    %547 = vmatpush1.bf16.msra.mxu0 %v526
    %548 = vmatprep.subr.bf16.mxu0 0
    %549 = vmatpush1.bf16.msra.mxu0 %v527
    %550 = vmatprep.subr.bf16.mxu0 0
    %551 = vmatpush1.bf16.msra.mxu0 %v528
    %552 = vmatprep.subr.bf16.mxu0 0
    %553 = vmatpush1.bf16.msra.mxu0 %v529
    %554 = vmatprep.subr.bf16.mxu0 0
    %555 = vmatpush1.bf16.msra.mxu0 0
    %556 = vmatprep.subr.bf16.mxu0 0
    %557 = vmatpush1.bf16.msra.mxu0 0
    %558 = vmatprep.subr.bf16.mxu0 0
    %559 = vmatpush1.bf16.msra.mxu0 0
    %560 = vmatprep.subr.bf16.mxu0 0
    %561 = vmatpush1.bf16.msra.mxu0 0
    %562 = vmatprep.subr.bf16.mxu0 0
    %563 = vmatpush1.bf16.msra.mxu0 0
    %564 = vmatprep.subr.bf16.mxu0 0
    %565 = vmatpush1.bf16.msra.mxu0 0
    %566 = vmatprep.subr.bf16.mxu0 0
    %567 = vmatpush1.bf16.msra.mxu0 0
    %568 = vmatprep.subr.bf16.mxu0 0
    %569 = vmatpush1.bf16.msra.mxu0 0
    %570 = vmatprep.mubr.bf16.mxu0 0
    %571 = vmatmul.mubr.bf16.gmra.mrb[0].mxu0 %v212
    %v572 = vpop.f32.mrb[0].mxu0
    %v573 = vadd.f32 0.0, %v572
    %v574 = vpop.f32.mrb[0].mxu0
    %v575 = vpop.f32.mrb[0].mxu0
    %v576 = vadd.f32 0.0, %v575
    %v577 = vpop.f32.mrb[0].mxu0
    %578 = vmatprep.mubr.bf16.mxu0 0
    %579 = vmatmul.mubr.bf16.gmra.mrb[0].mxu0 %v213
    %v580 = vpop.f32.mrb[0].mxu0
    %v581 = vadd.f32 0.0, %v580
    %v582 = vpop.f32.mrb[0].mxu0
    %v583 = vpop.f32.mrb[0].mxu0
    %v584 = vadd.f32 0.0, %v583
    %v585 = vpop.f32.mrb[0].mxu0
    %586 = vmatprep.mubr.bf16.mxu0 0
    %587 = vmatmul.mubr.bf16.gmra.mrb[0].mxu0 %v214
    %v588 = vpop.f32.mrb[0].mxu0
    %v589 = vadd.f32 0.0, %v588
    %v590 = vpop.f32.mrb[0].mxu0
    %v591 = vpop.f32.mrb[0].mxu0
    %v592 = vadd.f32 0.0, %v591
    %v593 = vpop.f32.mrb[0].mxu0
    %594 = vmatprep.mubr.bf16.mxu0 0
    %595 = vmatmul.mubr.bf16.gmra.mrb[0].mxu0 %v215
    %v596 = vpop.f32.mrb[0].mxu0
    %v597 = vadd.f32 0.0, %v596
    %v598 = vpop.f32.mrb[0].mxu0
    %v599 = vpop.f32.mrb[0].mxu0
    %v600 = vadd.f32 0.0, %v599
    %v601 = vpop.f32.mrb[0].mxu0
    %602 = vdwg.mxu0
    %v603 = vpack.c.bf16 %v318, %v315
    %v604 = vpack.c.bf16 %v326, %v323
    %v605 = vpack.c.bf16 %v334, %v331
    %v606 = vpack.c.bf16 %v342, %v339
    %v607 = vpack.c.bf16 %v447, %v444
    %v608 = vpack.c.bf16 %v455, %v452
    %v609 = vpack.c.bf16 %v463, %v460
    %v610 = vpack.c.bf16 %v471, %v468
    %vm611 = vcmask 64512
    %v613 = vsel %vm611, %v603, 0
    %v616 = vsel %vm611, %v604, 0
    %v619 = vsel %vm611, %v605, 0
    %v622 = vsel %vm611, %v606, 0
    %v625 = vsel %vm611, %v607, 0
    %v628 = vsel %vm611, %v608, 0
    %v631 = vsel %vm611, %v609, 0
    %v634 = vsel %vm611, %v610, 0
    %636 = vmatprep.subr.bf16.mxu0 0
    %637 = vmatpush1.bf16.xpose.msra.mxu0 %v625
    %638 = vmatprep.subr.bf16.mxu0 0
    %639 = vmatpush1.bf16.xpose.msra.mxu0 %v628
    %640 = vmatprep.subr.bf16.mxu0 0
    %641 = vmatpush1.bf16.xpose.msra.mxu0 %v631
    %642 = vmatprep.subr.bf16.mxu0 0
    %643 = vmatpush1.bf16.xpose.msra.mxu0 %v634
    %644 = vmatprep.subr.bf16.mxu0 0
    %645 = vmatpush1.bf16.xpose.msra.mxu0 0
    %646 = vmatprep.subr.bf16.mxu0 0
    %647 = vmatpush1.bf16.xpose.msra.mxu0 0
    %648 = vmatprep.subr.bf16.mxu0 0
    %649 = vmatpush1.bf16.xpose.msra.mxu0 0
    %650 = vmatprep.subr.bf16.mxu0 0
    %651 = vmatpush1.bf16.xpose.msra.mxu0 0
    %652 = vmatprep.subr.bf16.mxu0 0
    %653 = vmatpush1.bf16.xpose.msra.mxu0 0
    %654 = vmatprep.subr.bf16.mxu0 0
    %655 = vmatpush1.bf16.xpose.msra.mxu0 0
    %656 = vmatprep.subr.bf16.mxu0 0
    %657 = vmatpush1.bf16.xpose.msra.mxu0 0
    %658 = vmatprep.subr.bf16.mxu0 0
    %659 = vmatpush1.bf16.xpose.msra.mxu0 0
    %660 = vmatprep.subr.bf16.mxu0 0
    %661 = vmatpush1.bf16.xpose.msra.mxu0 0
    %662 = vmatprep.subr.bf16.mxu0 0
    %663 = vmatpush1.bf16.xpose.msra.mxu0 0
    %664 = vmatprep.subr.bf16.mxu0 0
    %665 = vmatpush1.bf16.xpose.msra.mxu0 0
    %666 = vmatprep.subr.bf16.mxu0 0
    %667 = vmatpush1.bf16.xpose.msra.mxu0 0
    %668 = vmatprep.mubr.bf16.mxu0 0
    %669 = vmatmul.mubr.bf16.gmra.mrb[0].mxu0 %v613
    %v670 = vpop.f32.mrb[0].mxu0
    %v671 = vadd.f32 %v86, %v670
    %v672 = vpop.f32.mrb[0].mxu0
    %v673 = vpop.f32.mrb[0].mxu0
    %v674 = vadd.f32 %v87, %v673
    %v675 = vpop.f32.mrb[0].mxu0
    %676 = vmatprep.mubr.bf16.mxu0 0
    %677 = vmatmul.mubr.bf16.gmra.mrb[0].mxu0 %v616
    %v678 = vpop.f32.mrb[0].mxu0
    %v679 = vadd.f32 %v88, %v678
    %v680 = vpop.f32.mrb[0].mxu0
    %v681 = vpop.f32.mrb[0].mxu0
    %v682 = vadd.f32 %v89, %v681
    %v683 = vpop.f32.mrb[0].mxu0
    %684 = vmatprep.mubr.bf16.mxu0 0
    %685 = vmatmul.mubr.bf16.gmra.mrb[0].mxu0 %v619
    %v686 = vpop.f32.mrb[0].mxu0
    %v687 = vadd.f32 %v90, %v686
    %v688 = vpop.f32.mrb[0].mxu0
    %v689 = vpop.f32.mrb[0].mxu0
    %v690 = vadd.f32 %v91, %v689
    %v691 = vpop.f32.mrb[0].mxu0
    %692 = vmatprep.mubr.bf16.mxu0 0
    %693 = vmatmul.mubr.bf16.gmra.mrb[0].mxu0 %v622
    %v694 = vpop.f32.mrb[0].mxu0
    %v695 = vadd.f32 %v92, %v694
    %v696 = vpop.f32.mrb[0].mxu0
    %v697 = vpop.f32.mrb[0].mxu0
    %v698 = vadd.f32 %v93, %v697
    %v699 = vpop.f32.mrb[0].mxu0
    %700 = vdwg.mxu0
    %v701 = vsel %vm174, %v671, -inf
    %702 = vmax.xlane.f32.xlu0 %v701
    %v703 = vpop.xlane.xlu0 %702
    %v704 = vsel %vm174, %v674, -inf
    %705 = vmax.xlane.f32.xlu0 %v704
    %v706 = vpop.xlane.xlu0 %705
    %v707 = vsel %vm174, %v679, -inf
    %708 = vmax.xlane.f32.xlu0 %v707
    %v709 = vpop.xlane.xlu0 %708
    %v710 = vsel %vm174, %v682, -inf
    %711 = vmax.xlane.f32.xlu0 %v710
    %v712 = vpop.xlane.xlu0 %711
    %v713 = vsel %vm174, %v687, -inf
    %714 = vmax.xlane.f32.xlu0 %v713
    %v715 = vpop.xlane.xlu0 %714
    %v716 = vsel %vm174, %v690, -inf
    %717 = vmax.xlane.f32.xlu0 %v716
    %v718 = vpop.xlane.xlu0 %717
    %v719 = vsel %vm174, %v695, -inf
    %720 = vmax.xlane.f32.xlu0 %v719
    %v721 = vpop.xlane.xlu0 %720
    %v722 = vsel %vm174, %v698, -inf
    %723 = vmax.xlane.f32.xlu0 %v722
    %v724 = vpop.xlane.xlu0 %723
    %v725 = vsub.f32 %v671, %v703
    %v726 = vsub.f32 %v674, %v706
    %v727 = vsub.f32 %v679, %v709
    %v728 = vsub.f32 %v682, %v712
    %v729 = vsub.f32 %v687, %v715
    %v730 = vsub.f32 %v690, %v718
    %v731 = vsub.f32 %v695, %v721
    %v732 = vsub.f32 %v698, %v724
    %v733 = vmul.f32 %v725, 1.442695
    %v734 = vpow.pop %v733
    %v735 = vmul.f32 %v726, 1.442695
    %v736 = vpow.pop %v735
    %v737 = vmul.f32 %v727, 1.442695
    %v738 = vpow.pop %v737
    %v739 = vmul.f32 %v728, 1.442695
    %v740 = vpow.pop %v739
    %v741 = vmul.f32 %v729, 1.442695
    %v742 = vpow.pop %v741
    %v743 = vmul.f32 %v730, 1.442695
    %v744 = vpow.pop %v743
    %v745 = vmul.f32 %v731, 1.442695
    %v746 = vpow.pop %v745
    %v747 = vmul.f32 %v732, 1.442695
    %v748 = vpow.pop %v747
    %v749 = vsel %vm174, %v734, 0.0
    %750 = vadd.xlane.f32.xlu0 %v749
    %v751 = vpop.xlane.xlu0 %750
    %v752 = vsel %vm174, %v736, 0.0
    %753 = vadd.xlane.f32.xlu0 %v752
    %v754 = vpop.xlane.xlu0 %753
    %v755 = vsel %vm174, %v738, 0.0
    %756 = vadd.xlane.f32.xlu0 %v755
    %v757 = vpop.xlane.xlu0 %756
    %v758 = vsel %vm174, %v740, 0.0
    %759 = vadd.xlane.f32.xlu0 %v758
    %v760 = vpop.xlane.xlu0 %759
    %v761 = vsel %vm174, %v742, 0.0
    %762 = vadd.xlane.f32.xlu0 %v761
    %v763 = vpop.xlane.xlu0 %762
    %v764 = vsel %vm174, %v744, 0.0
    %765 = vadd.xlane.f32.xlu0 %v764
    %v766 = vpop.xlane.xlu0 %765
    %v767 = vsel %vm174, %v746, 0.0
    %768 = vadd.xlane.f32.xlu0 %v767
    %v769 = vpop.xlane.xlu0 %768
    %v770 = vsel %vm174, %v748, 0.0
    %771 = vadd.xlane.f32.xlu0 %v770
    %v772 = vpop.xlane.xlu0 %771
    %v773 = vrcp.pop %v751
    %v774 = vrcp.pop %v754
    %v775 = vrcp.pop %v757
    %v776 = vrcp.pop %v760
    %v777 = vrcp.pop %v763
    %v778 = vrcp.pop %v766
    %v779 = vrcp.pop %v769
    %v780 = vrcp.pop %v772
    %v781 = vmul.f32 %v734, %v773
    %v782 = vmul.f32 %v736, %v774
    %v783 = vmul.f32 %v738, %v775
    %v784 = vmul.f32 %v740, %v776
    %v785 = vmul.f32 %v742, %v777
    %v786 = vmul.f32 %v744, %v778
    %v787 = vmul.f32 %v746, %v779
    %v788 = vmul.f32 %v748, %v780
    %v789 = vpack.c.bf16 %v782, %v781
    %v790 = vpack.c.bf16 %v784, %v783
    %v791 = vpack.c.bf16 %v786, %v785
    %v792 = vpack.c.bf16 %v788, %v787
    %v793 = vpack.c.bf16 %v576, %v573
    %v794 = vpack.c.bf16 %v584, %v581
    %v795 = vpack.c.bf16 %v592, %v589
    %v796 = vpack.c.bf16 %v600, %v597
    %v798 = vsel %vm174, %v789, 0
    %v801 = vsel %vm174, %v790, 0
    %v804 = vsel %vm174, %v791, 0
    %v807 = vsel %vm174, %v792, 0
    %809 = vmatprep.subr.bf16.mxu0 0
    %810 = vmatpush1.bf16.msra.mxu0 %v793
    %811 = vmatprep.subr.bf16.mxu0 0
    %812 = vmatpush1.bf16.msra.mxu0 %v794
    %813 = vmatprep.subr.bf16.mxu0 0
    %814 = vmatpush1.bf16.msra.mxu0 %v795
    %815 = vmatprep.subr.bf16.mxu0 0
    %816 = vmatpush1.bf16.msra.mxu0 %v796
    %817 = vmatprep.subr.bf16.mxu0 0
    %818 = vmatpush1.bf16.msra.mxu0 0
    %819 = vmatprep.subr.bf16.mxu0 0
    %820 = vmatpush1.bf16.msra.mxu0 0
    %821 = vmatprep.subr.bf16.mxu0 0
    %822 = vmatpush1.bf16.msra.mxu0 0
    %823 = vmatprep.subr.bf16.mxu0 0
    %824 = vmatpush1.bf16.msra.mxu0 0
    %825 = vmatprep.subr.bf16.mxu0 0
    %826 = vmatpush1.bf16.msra.mxu0 0
    %827 = vmatprep.subr.bf16.mxu0 0
    %828 = vmatpush1.bf16.msra.mxu0 0
    %829 = vmatprep.subr.bf16.mxu0 0
    %830 = vmatpush1.bf16.msra.mxu0 0
    %831 = vmatprep.subr.bf16.mxu0 0
    %832 = vmatpush1.bf16.msra.mxu0 0
    %833 = vmatprep.subr.bf16.mxu0 0
    %834 = vmatpush1.bf16.msra.mxu0 0
    %835 = vmatprep.subr.bf16.mxu0 0
    %836 = vmatpush1.bf16.msra.mxu0 0
    %837 = vmatprep.subr.bf16.mxu0 0
    %838 = vmatpush1.bf16.msra.mxu0 0
    %839 = vmatprep.subr.bf16.mxu0 0
    %840 = vmatpush1.bf16.msra.mxu0 0
    %841 = vmatprep.mubr.bf16.mxu0 0
    %842 = vmatmul.mubr.bf16.gmra.mrb[0].mxu0 %v798
    %v843 = vpop.f32.mrb[0].mxu0
    %v844 = vadd.f32 0.0, %v843
    %v845 = vpop.f32.mrb[0].mxu0
    %v846 = vpop.f32.mrb[0].mxu0
    %v847 = vadd.f32 0.0, %v846
    %v848 = vpop.f32.mrb[0].mxu0
    %849 = vmatprep.mubr.bf16.mxu0 0
    %850 = vmatmul.mubr.bf16.gmra.mrb[0].mxu0 %v801
    %v851 = vpop.f32.mrb[0].mxu0
    %v852 = vadd.f32 0.0, %v851
    %v853 = vpop.f32.mrb[0].mxu0
    %v854 = vpop.f32.mrb[0].mxu0
    %v855 = vadd.f32 0.0, %v854
    %v856 = vpop.f32.mrb[0].mxu0
    %857 = vmatprep.mubr.bf16.mxu0 0
    %858 = vmatmul.mubr.bf16.gmra.mrb[0].mxu0 %v804
    %v859 = vpop.f32.mrb[0].mxu0
    %v860 = vadd.f32 0.0, %v859
    %v861 = vpop.f32.mrb[0].mxu0
    %v862 = vpop.f32.mrb[0].mxu0
    %v863 = vadd.f32 0.0, %v862
    %v864 = vpop.f32.mrb[0].mxu0
    %865 = vmatprep.mubr.bf16.mxu0 0
    %866 = vmatmul.mubr.bf16.gmra.mrb[0].mxu0 %v807
    %v867 = vpop.f32.mrb[0].mxu0
    %v868 = vadd.f32 0.0, %v867
    %v869 = vpop.f32.mrb[0].mxu0
    %v870 = vpop.f32.mrb[0].mxu0
    %v871 = vadd.f32 0.0, %v870
    %v872 = vpop.f32.mrb[0].mxu0
    %873 = vdwg.mxu0
    %v874 = vadd.f32 %v844, %v852
    %v875 = vadd.f32 %v847, %v855
    %v876 = vadd.f32 %v874, %v860
    %v877 = vadd.f32 %v875, %v863
    %v878 = vadd.f32 %v876, %v868
    %v879 = vadd.f32 %v877, %v871
    %v880 = vlaneseq
    %v881 = vshrl.u32 %v880, 7
    %v882 = vsub.s32 0, %v881
    %v883 = vrot.slane %v170, %v882
    %v884 = vadd.f32 %v878, %v883
    %v885 = vadd.f32 %v879, %v883
    %v886 = vadd.f32 %v148, %v884
    %v887 = vadd.f32 %v151, %v885
    %v888 = vsel %vm171, %v886, 0.0
    %889 = vadd.xlane.f32.xlu0 %v888
    %v890 = vpop.xlane.xlu0 %889
    %v891 = vsel %vm171, %v887, 0.0
    %892 = vadd.xlane.f32.xlu0 %v891
    %v893 = vpop.xlane.xlu0 %892
    %v894 = vrcp.pop 32.0
    %v895 = vmul.f32 %v890, %v894
    %v896 = vmul.f32 %v893, %v894
    %v897 = vsub.f32 %v886, %v895
    %v898 = vsub.f32 %v887, %v896
    %v899 = vmul.f32 %v897, %v897
    %v900 = vmul.f32 %v898, %v898
    %v901 = vsel %vm171, %v899, 0.0
    %902 = vadd.xlane.f32.xlu0 %v901
    %v903 = vpop.xlane.xlu0 %902
    %v904 = vsel %vm171, %v900, 0.0
    %905 = vadd.xlane.f32.xlu0 %v904
    %v906 = vpop.xlane.xlu0 %905
    %v907 = vmul.f32 %v903, %v894
    %v908 = vmul.f32 %v906, %v894
    %v909 = vadd.f32 %v907, 1e-05
    %v910 = vadd.f32 %v908, 1e-05
    %v911 = vrsqrt.pop %v909
    %v912 = vrsqrt.pop %v910
    %v913 = vmul.f32 %v897, %v911
    %v914 = vmul.f32 %v898, %v912
    %v915 = vlaneseq
    %v916 = vshrl.u32 %v915, 7
    %v917 = vsub.s32 1, %v916
    %v918 = vrot.slane %v170, %v917
    %v919 = vmul.f32 %v913, %v918
    %v920 = vmul.f32 %v914, %v918
    %v921 = vlaneseq
    %v922 = vshrl.u32 %v921, 7
    %v923 = vsub.s32 2, %v922
    %v924 = vrot.slane %v170, %v923
    %v925 = vadd.f32 %v919, %v924
    %v926 = vadd.f32 %v920, %v924
    %v927 = vpack.c.bf16 %v926, %v925
    %v928 = vld [vmem:[#allocation5 + $0xc0] sm:$0xf]
    %v929 = vld [vmem:[#allocation5 + $0xc4] sm:$0xf]
    %v930 = vld [vmem:[#allocation5 + $0xc8] sm:$0xf]
    %v931 = vld [vmem:[#allocation5 + $0xcc] sm:$0xf]
    %v932 = vlaneseq
    %v933 = vshrl.u32 %v932, 7
    %v934 = vsub.s32 3, %v933
    %v935 = vrot.slane %v170, %v934
    %v940 = vunpack.c.l.b16 %v928
    %v941 = vunpack.c.l.b16 %v929
    %v942 = vunpack.c.l.b16 %v930
    %v943 = vunpack.c.l.b16 %v931
    %v944 = vpack.c.b16 %v941, %v940
    %v945 = vpack.c.b16 %v943, %v942
    %v949 = vsel %vm171, %v927, 0
    %951 = vmatprep.subr.bf16.mxu0 0
    %952 = vmatpush1.bf16.msra.mxu0 %v944
    %953 = vmatprep.subr.bf16.mxu0 0
    %954 = vmatpush1.bf16.msra.mxu0 %v945
    %955 = vmatprep.subr.bf16.mxu0 0
    %956 = vmatpush1.bf16.msra.mxu0 0
    %957 = vmatprep.subr.bf16.mxu0 0
    %958 = vmatpush1.bf16.msra.mxu0 0
    %959 = vmatprep.subr.bf16.mxu0 0
    %960 = vmatpush1.bf16.msra.mxu0 0
    %961 = vmatprep.subr.bf16.mxu0 0
    %962 = vmatpush1.bf16.msra.mxu0 0
    %963 = vmatprep.subr.bf16.mxu0 0
    %964 = vmatpush1.bf16.msra.mxu0 0
    %965 = vmatprep.subr.bf16.mxu0 0
    %966 = vmatpush1.bf16.msra.mxu0 0
    %967 = vmatprep.subr.bf16.mxu0 0
    %968 = vmatpush1.bf16.msra.mxu0 0
    %969 = vmatprep.subr.bf16.mxu0 0
    %970 = vmatpush1.bf16.msra.mxu0 0
    %971 = vmatprep.subr.bf16.mxu0 0
    %972 = vmatpush1.bf16.msra.mxu0 0
    %973 = vmatprep.subr.bf16.mxu0 0
    %974 = vmatpush1.bf16.msra.mxu0 0
    %975 = vmatprep.subr.bf16.mxu0 0
    %976 = vmatpush1.bf16.msra.mxu0 0
    %977 = vmatprep.subr.bf16.mxu0 0
    %978 = vmatpush1.bf16.msra.mxu0 0
    %979 = vmatprep.subr.bf16.mxu0 0
    %980 = vmatpush1.bf16.msra.mxu0 0
    %981 = vmatprep.subr.bf16.mxu0 0
    %982 = vmatpush1.bf16.msra.mxu0 0
    %983 = vmatprep.mubr.bf16.mxu0 0
    %984 = vmatmul.mubr.bf16.gmra.mrb[0].mxu0 %v949
    %v985 = vpop.f32.mrb[0].mxu0
    %v986 = vadd.f32 %v935, %v985
    %v987 = vpop.f32.mrb[0].mxu0
    %v988 = vpop.f32.mrb[0].mxu0
    %v989 = vadd.f32 %v935, %v988
    %v990 = vpop.f32.mrb[0].mxu0
    %991 = vdwg.mxu0
    %v992 = vmax.f32 %v986, 0.0
    %v993 = vmax.f32 %v989, 0.0
    %v994 = vpack.c.bf16 %v993, %v992
    %v995 = vld [vmem:[#allocation5 + $0xd0] sm:$0xf]
    %v996 = vld [vmem:[#allocation5 + $0xd4] sm:$0xf]
    %v997 = vld [vmem:[#allocation5 + $0xd8] sm:$0xf]
    %v998 = vld [vmem:[#allocation5 + $0xdc] sm:$0xf]
    %v999 = vld [vmem:[#allocation5 + $0xe0] sm:$0xf]
    %v1000 = vld [vmem:[#allocation5 + $0xe4] sm:$0xf]
    %v1001 = vld [vmem:[#allocation5 + $0xe8] sm:$0xf]
    %v1002 = vld [vmem:[#allocation5 + $0xec] sm:$0xf]
    %v1003 = vlaneseq
    %v1004 = vshrl.u32 %v1003, 7
    %v1005 = vsub.s32 4, %v1004
    %v1006 = vrot.slane %v170, %v1005
    %v1015 = vunpack.c.l.b16 %v995
    %v1016 = vunpack.c.l.b16 %v996
    %v1017 = vunpack.c.l.b16 %v997
    %v1018 = vunpack.c.l.b16 %v998
    %v1019 = vunpack.c.l.b16 %v999
    %v1020 = vunpack.c.l.b16 %v1000
    %v1021 = vunpack.c.l.b16 %v1001
    %v1022 = vunpack.c.l.b16 %v1002
    %v1023 = vpack.c.b16 %v1016, %v1015
    %v1024 = vpack.c.b16 %v1018, %v1017
    %v1025 = vpack.c.b16 %v1020, %v1019
    %v1026 = vpack.c.b16 %v1022, %v1021
    %v1032 = vsel %vm174, %v994, 0
    %1034 = vmatprep.subr.bf16.mxu0 0
    %1035 = vmatpush1.bf16.msra.mxu0 %v1023
    %1036 = vmatprep.subr.bf16.mxu0 0
    %1037 = vmatpush1.bf16.msra.mxu0 %v1024
    %1038 = vmatprep.subr.bf16.mxu0 0
    %1039 = vmatpush1.bf16.msra.mxu0 %v1025
    %1040 = vmatprep.subr.bf16.mxu0 0
    %1041 = vmatpush1.bf16.msra.mxu0 %v1026
    %1042 = vmatprep.subr.bf16.mxu0 0
    %1043 = vmatpush1.bf16.msra.mxu0 0
    %1044 = vmatprep.subr.bf16.mxu0 0
    %1045 = vmatpush1.bf16.msra.mxu0 0
    %1046 = vmatprep.subr.bf16.mxu0 0
    %1047 = vmatpush1.bf16.msra.mxu0 0
    %1048 = vmatprep.subr.bf16.mxu0 0
    %1049 = vmatpush1.bf16.msra.mxu0 0
    %1050 = vmatprep.subr.bf16.mxu0 0
    %1051 = vmatpush1.bf16.msra.mxu0 0
    %1052 = vmatprep.subr.bf16.mxu0 0
    %1053 = vmatpush1.bf16.msra.mxu0 0
    %1054 = vmatprep.subr.bf16.mxu0 0
    %1055 = vmatpush1.bf16.msra.mxu0 0
    %1056 = vmatprep.subr.bf16.mxu0 0
    %1057 = vmatpush1.bf16.msra.mxu0 0
    %1058 = vmatprep.subr.bf16.mxu0 0
    %1059 = vmatpush1.bf16.msra.mxu0 0
    %1060 = vmatprep.subr.bf16.mxu0 0
    %1061 = vmatpush1.bf16.msra.mxu0 0
    %1062 = vmatprep.subr.bf16.mxu0 0
    %1063 = vmatpush1.bf16.msra.mxu0 0
    %1064 = vmatprep.subr.bf16.mxu0 0
    %1065 = vmatpush1.bf16.msra.mxu0 0
    %1066 = vmatprep.mubr.bf16.mxu0 0
    %1067 = vmatmul.mubr.bf16.gmra.mrb[0].mxu0 %v1032
    %v1068 = vpop.f32.mrb[0].mxu0
    %v1069 = vadd.f32 %v1006, %v1068
    %v1070 = vpop.f32.mrb[0].mxu0
    %v1071 = vpop.f32.mrb[0].mxu0
    %v1072 = vadd.f32 %v1006, %v1071
    %v1073 = vpop.f32.mrb[0].mxu0
    %1074 = vdwg.mxu0
    %v1075 = vadd.f32 %v925, %v1069
    %v1076 = vadd.f32 %v926, %v1072
    %v1077 = vsel %vm171, %v1075, 0.0
    %1078 = vadd.xlane.f32.xlu0 %v1077
    %v1079 = vpop.xlane.xlu0 %1078
    %v1080 = vsel %vm171, %v1076, 0.0
    %1081 = vadd.xlane.f32.xlu0 %v1080
    %v1082 = vpop.xlane.xlu0 %1081
    %v1083 = vmul.f32 %v1079, %v894
    %v1084 = vmul.f32 %v1082, %v894
    %v1085 = vsub.f32 %v1075, %v1083
    %v1086 = vsub.f32 %v1076, %v1084
    %v1087 = vmul.f32 %v1085, %v1085
    %v1088 = vmul.f32 %v1086, %v1086
    %v1089 = vsel %vm171, %v1087, 0.0
    %1090 = vadd.xlane.f32.xlu0 %v1089
    %v1091 = vpop.xlane.xlu0 %1090
    %v1092 = vsel %vm171, %v1088, 0.0
    %1093 = vadd.xlane.f32.xlu0 %v1092
    %v1094 = vpop.xlane.xlu0 %1093
    %v1095 = vmul.f32 %v1091, %v894
    %v1096 = vmul.f32 %v1094, %v894
    %v1097 = vadd.f32 %v1095, 1e-05
    %v1098 = vadd.f32 %v1096, 1e-05
    %v1099 = vrsqrt.pop %v1097
    %v1100 = vrsqrt.pop %v1098
    %v1101 = vmul.f32 %v1085, %v1099
    %v1102 = vmul.f32 %v1086, %v1100
    %v1103 = vlaneseq
    %v1104 = vshrl.u32 %v1103, 7
    %v1105 = vsub.s32 5, %v1104
    %v1106 = vrot.slane %v170, %v1105
    %v1107 = vmul.f32 %v1101, %v1106
    %v1108 = vmul.f32 %v1102, %v1106
    %v1109 = vlaneseq
    %v1110 = vshrl.u32 %v1109, 7
    %v1111 = vsub.s32 6, %v1110
    %v1112 = vrot.slane %v170, %v1111
    %v1113 = vadd.f32 %v1107, %v1112
    %v1114 = vadd.f32 %v1108, %v1112
    %v1115 = vld [vmem:[#allocation7 + $0x88] sm:$0xff]
    %v1116 = vld [vmem:[#allocation7 + $0x90] sm:$0xff]
    %v1117 = vld [vmem:[#allocation7 + $0x98] sm:$0xff]
    %v1118 = vld [vmem:[#allocation7 + $0xa0] sm:$0xff]
    %v1119 = vld [vmem:[#allocation7 + $0xa8] sm:$0xff]
    %v1120 = vld [vmem:[#allocation7 + $0xb0] sm:$0xff]
    %v1121 = vld [vmem:[#allocation7 + $0xb8] sm:$0xff]
    %v1122 = vld [vmem:[#allocation7 + $0xc0] sm:$0xff]
    %v1123 = vld [vmem:[#allocation7 + $0xc8] sm:$0xff]
    %v1124 = vld [vmem:[#allocation7 + $0xd0] sm:$0xff]
    %v1125 = vld [vmem:[#allocation7 + $0xd8] sm:$0xff]
    %v1126 = vld [vmem:[#allocation7 + $0xe0] sm:$0xff]
    %v1127 = vld [vmem:[#allocation7 + $0xe8] sm:$0xff]
    %v1128 = vld [vmem:[#allocation7 + $0xf0] sm:$0xff]
    %v1129 = vld [vmem:[#allocation7 + $0xf8] sm:$0xff]
    %v1130 = vld [vmem:[#allocation7 + $0x100] sm:$0xff]
    %v1131 = vld [vmem:[#allocation7 + $0x108] sm:$0xff]
    %v1132 = vsel %vm171, %v1113, 0.0
    %v1133 = vsel %vm171, %v1114, 0.0
    %v1134 = vsel %vm174, %v1132, 0.0
    %v1135 = vsel %vm174, %v1133, 0.0
    %v1136 = vsel %vm177, %v1134, 0.0
    %v1137 = vsel %vm177, %v1135, 0.0
    %1140 = vrot.lane.b32.xlu0 %v1113, 32
    %v1141 = vpop.permute.xlu0 %1140
    %1142 = vrot.lane.b32.xlu0 %v1114, 32
    %v1143 = vpop.permute.xlu0 %1142
    %v1146 = vsel %vm171, 0.0, %v1141
    %v1147 = vsel %vm171, 0.0, %v1143
    %v1148 = vsel %vm174, %v1146, 0.0
    %v1149 = vsel %vm174, %v1147, 0.0
    %v1150 = vsel %vm177, %v1148, 0.0
    %v1151 = vsel %vm177, %v1149, 0.0
    %1152 = vrot.lane.b32.xlu0 %v1113, 64
    %v1153 = vpop.permute.xlu0 %1152
    %1154 = vrot.lane.b32.xlu0 %v1114, 64
    %v1155 = vpop.permute.xlu0 %1154
    %v1158 = vsel %vm174, 0.0, %v1153
    %v1159 = vsel %vm174, 0.0, %v1155
    %v1160 = vsel %vm177, %v1158, 0.0
    %v1161 = vsel %vm177, %v1159, 0.0
    %1162 = vrot.lane.b32.xlu0 %v1113, 96
    %v1163 = vpop.permute.xlu0 %1162
    %1164 = vrot.lane.b32.xlu0 %v1114, 96
    %v1165 = vpop.permute.xlu0 %1164
    %v1168 = vsel %vm177, 0.0, %v1163
    %v1169 = vsel %vm177, 0.0, %v1165
    %v1170 = vpack.c.bf16 %v1137, %v1136
    %v1171 = vpack.c.bf16 %v1151, %v1150
    %v1172 = vpack.c.bf16 %v1161, %v1160
    %v1173 = vpack.c.bf16 %v1169, %v1168
    %v1174 = vld [vmem:[#allocation5 + $0xf0] sm:$0xf]
    %v1175 = vld [vmem:[#allocation5 + $0xf4] sm:$0xf]
    %v1176 = vld [vmem:[#allocation5 + $0xf8] sm:$0xf]
    %v1177 = vld [vmem:[#allocation5 + $0xfc] sm:$0xf]
    %v1178 = vld [vmem:[#allocation5 + $0x100] sm:$0xf]
    %v1179 = vld [vmem:[#allocation5 + $0x104] sm:$0xf]
    %v1180 = vld [vmem:[#allocation5 + $0x108] sm:$0xf]
    %v1181 = vld [vmem:[#allocation5 + $0x10c] sm:$0xf]
    %v1182 = vld [vmem:[#allocation5 + $0x110] sm:$0xf]
    %v1183 = vld [vmem:[#allocation5 + $0x114] sm:$0xf]
    %v1184 = vld [vmem:[#allocation5 + $0x118] sm:$0xf]
    %v1185 = vld [vmem:[#allocation5 + $0x11c] sm:$0xf]
    %v1186 = vld [vmem:[#allocation5 + $0x120] sm:$0xf]
    %v1187 = vld [vmem:[#allocation5 + $0x124] sm:$0xf]
    %v1188 = vld [vmem:[#allocation5 + $0x128] sm:$0xf]
    %v1189 = vld [vmem:[#allocation5 + $0x12c] sm:$0xf]
    %v1206 = vunpack.c.l.b16 %v1174
    %v1207 = vunpack.c.l.b16 %v1175
    %v1208 = vunpack.c.l.b16 %v1176
    %v1209 = vunpack.c.l.b16 %v1177
    %v1210 = vunpack.c.l.b16 %v1178
    %v1211 = vunpack.c.l.b16 %v1179
    %v1212 = vunpack.c.l.b16 %v1180
    %v1213 = vunpack.c.l.b16 %v1181
    %v1214 = vunpack.c.l.b16 %v1182
    %v1215 = vunpack.c.l.b16 %v1183
    %v1216 = vunpack.c.l.b16 %v1184
    %v1217 = vunpack.c.l.b16 %v1185
    %v1218 = vunpack.c.l.b16 %v1186
    %v1219 = vunpack.c.l.b16 %v1187
    %v1220 = vunpack.c.l.b16 %v1188
    %v1221 = vunpack.c.l.b16 %v1189
    %v1222 = vpack.c.b16 %v1207, %v1206
    %v1223 = vpack.c.b16 %v1209, %v1208
    %v1224 = vpack.c.b16 %v1211, %v1210
    %v1225 = vpack.c.b16 %v1213, %v1212
    %v1226 = vpack.c.b16 %v1215, %v1214
    %v1227 = vpack.c.b16 %v1217, %v1216
    %v1228 = vpack.c.b16 %v1219, %v1218
    %v1229 = vpack.c.b16 %v1221, %v1220
    %1238 = vmatprep.subr.bf16.mxu0 0
    %1239 = vmatpush1.bf16.msra.mxu0 %v1222
    %1240 = vmatprep.subr.bf16.mxu0 0
    %1241 = vmatpush1.bf16.msra.mxu0 %v1223
    %1242 = vmatprep.subr.bf16.mxu0 0
    %1243 = vmatpush1.bf16.msra.mxu0 %v1224
    %1244 = vmatprep.subr.bf16.mxu0 0
    %1245 = vmatpush1.bf16.msra.mxu0 %v1225
    %1246 = vmatprep.subr.bf16.mxu0 0
    %1247 = vmatpush1.bf16.msra.mxu0 %v1226
    %1248 = vmatprep.subr.bf16.mxu0 0
    %1249 = vmatpush1.bf16.msra.mxu0 %v1227
    %1250 = vmatprep.subr.bf16.mxu0 0
    %1251 = vmatpush1.bf16.msra.mxu0 %v1228
    %1252 = vmatprep.subr.bf16.mxu0 0
    %1253 = vmatpush1.bf16.msra.mxu0 %v1229
    %1254 = vmatprep.subr.bf16.mxu0 0
    %1255 = vmatpush1.bf16.msra.mxu0 0
    %1256 = vmatprep.subr.bf16.mxu0 0
    %1257 = vmatpush1.bf16.msra.mxu0 0
    %1258 = vmatprep.subr.bf16.mxu0 0
    %1259 = vmatpush1.bf16.msra.mxu0 0
    %1260 = vmatprep.subr.bf16.mxu0 0
    %1261 = vmatpush1.bf16.msra.mxu0 0
    %1262 = vmatprep.subr.bf16.mxu0 0
    %1263 = vmatpush1.bf16.msra.mxu0 0
    %1264 = vmatprep.subr.bf16.mxu0 0
    %1265 = vmatpush1.bf16.msra.mxu0 0
    %1266 = vmatprep.subr.bf16.mxu0 0
    %1267 = vmatpush1.bf16.msra.mxu0 0
    %1268 = vmatprep.subr.bf16.mxu0 0
    %1269 = vmatpush1.bf16.msra.mxu0 0
    %1270 = vmatprep.mubr.bf16.mxu0 0
    %1271 = vmatmul.mubr.bf16.gmra.mrb[0].mxu0 %v1170
    %v1272 = vpop.f32.mrb[0].mxu0
    %v1273 = vadd.f32 %v1115, %v1272
    %v1274 = vpop.f32.mrb[0].mxu0
    %v1275 = vpop.f32.mrb[0].mxu0
    %v1276 = vadd.f32 %v1116, %v1275
    %v1277 = vpop.f32.mrb[0].mxu0
    %1278 = vmatprep.mubr.bf16.mxu0 0
    %1279 = vmatmul.mubr.bf16.gmra.mrb[0].mxu0 %v1171
    %v1280 = vpop.f32.mrb[0].mxu0
    %v1281 = vadd.f32 %v1117, %v1280
    %v1282 = vpop.f32.mrb[0].mxu0
    %v1283 = vpop.f32.mrb[0].mxu0
    %v1284 = vadd.f32 %v1118, %v1283
    %v1285 = vpop.f32.mrb[0].mxu0
    %1286 = vmatprep.mubr.bf16.mxu0 0
    %1287 = vmatmul.mubr.bf16.gmra.mrb[0].mxu0 %v1172
    %v1288 = vpop.f32.mrb[0].mxu0
    %v1289 = vadd.f32 %v1119, %v1288
    %v1290 = vpop.f32.mrb[0].mxu0
    %v1291 = vpop.f32.mrb[0].mxu0
    %v1292 = vadd.f32 %v1120, %v1291
    %v1293 = vpop.f32.mrb[0].mxu0
    %1294 = vmatprep.mubr.bf16.mxu0 0
    %1295 = vmatmul.mubr.bf16.gmra.mrb[0].mxu0 %v1173
    %v1296 = vpop.f32.mrb[0].mxu0
    %v1297 = vadd.f32 %v1121, %v1296
    %v1298 = vpop.f32.mrb[0].mxu0
    %v1299 = vpop.f32.mrb[0].mxu0
    %v1300 = vadd.f32 %v1122, %v1299
    %v1301 = vpop.f32.mrb[0].mxu0
    %1302 = vdwg.mxu0
    %v1303 = vld [vmem:[#allocation5 + $0x130] sm:$0xf]
    %v1304 = vld [vmem:[#allocation5 + $0x134] sm:$0xf]
    %v1305 = vld [vmem:[#allocation5 + $0x138] sm:$0xf]
    %v1306 = vld [vmem:[#allocation5 + $0x13c] sm:$0xf]
    %v1307 = vld [vmem:[#allocation5 + $0x140] sm:$0xf]
    %v1308 = vld [vmem:[#allocation5 + $0x144] sm:$0xf]
    %v1309 = vld [vmem:[#allocation5 + $0x148] sm:$0xf]
    %v1310 = vld [vmem:[#allocation5 + $0x14c] sm:$0xf]
    %v1311 = vld [vmem:[#allocation5 + $0x150] sm:$0xf]
    %v1312 = vld [vmem:[#allocation5 + $0x154] sm:$0xf]
    %v1313 = vld [vmem:[#allocation5 + $0x158] sm:$0xf]
    %v1314 = vld [vmem:[#allocation5 + $0x15c] sm:$0xf]
    %v1315 = vld [vmem:[#allocation5 + $0x160] sm:$0xf]
    %v1316 = vld [vmem:[#allocation5 + $0x164] sm:$0xf]
    %v1317 = vld [vmem:[#allocation5 + $0x168] sm:$0xf]
    %v1318 = vld [vmem:[#allocation5 + $0x16c] sm:$0xf]
    %v1335 = vunpack.c.l.b16 %v1303
    %v1336 = vunpack.c.l.b16 %v1304
    %v1337 = vunpack.c.l.b16 %v1305
    %v1338 = vunpack.c.l.b16 %v1306
    %v1339 = vunpack.c.l.b16 %v1307
    %v1340 = vunpack.c.l.b16 %v1308
    %v1341 = vunpack.c.l.b16 %v1309
    %v1342 = vunpack.c.l.b16 %v1310
    %v1343 = vunpack.c.l.b16 %v1311
    %v1344 = vunpack.c.l.b16 %v1312
    %v1345 = vunpack.c.l.b16 %v1313
    %v1346 = vunpack.c.l.b16 %v1314
    %v1347 = vunpack.c.l.b16 %v1315
    %v1348 = vunpack.c.l.b16 %v1316
    %v1349 = vunpack.c.l.b16 %v1317
    %v1350 = vunpack.c.l.b16 %v1318
    %v1351 = vpack.c.b16 %v1336, %v1335
    %v1352 = vpack.c.b16 %v1338, %v1337
    %v1353 = vpack.c.b16 %v1340, %v1339
    %v1354 = vpack.c.b16 %v1342, %v1341
    %v1355 = vpack.c.b16 %v1344, %v1343
    %v1356 = vpack.c.b16 %v1346, %v1345
    %v1357 = vpack.c.b16 %v1348, %v1347
    %v1358 = vpack.c.b16 %v1350, %v1349
    %1367 = vmatprep.subr.bf16.mxu0 0
    %1368 = vmatpush1.bf16.msra.mxu0 %v1351
    %1369 = vmatprep.subr.bf16.mxu0 0
    %1370 = vmatpush1.bf16.msra.mxu0 %v1352
    %1371 = vmatprep.subr.bf16.mxu0 0
    %1372 = vmatpush1.bf16.msra.mxu0 %v1353
    %1373 = vmatprep.subr.bf16.mxu0 0
    %1374 = vmatpush1.bf16.msra.mxu0 %v1354
    %1375 = vmatprep.subr.bf16.mxu0 0
    %1376 = vmatpush1.bf16.msra.mxu0 %v1355
    %1377 = vmatprep.subr.bf16.mxu0 0
    %1378 = vmatpush1.bf16.msra.mxu0 %v1356
    %1379 = vmatprep.subr.bf16.mxu0 0
    %1380 = vmatpush1.bf16.msra.mxu0 %v1357
    %1381 = vmatprep.subr.bf16.mxu0 0
    %1382 = vmatpush1.bf16.msra.mxu0 %v1358
    %1383 = vmatprep.subr.bf16.mxu0 0
    %1384 = vmatpush1.bf16.msra.mxu0 0
    %1385 = vmatprep.subr.bf16.mxu0 0
    %1386 = vmatpush1.bf16.msra.mxu0 0
    %1387 = vmatprep.subr.bf16.mxu0 0
    %1388 = vmatpush1.bf16.msra.mxu0 0
    %1389 = vmatprep.subr.bf16.mxu0 0
    %1390 = vmatpush1.bf16.msra.mxu0 0
    %1391 = vmatprep.subr.bf16.mxu0 0
    %1392 = vmatpush1.bf16.msra.mxu0 0
    %1393 = vmatprep.subr.bf16.mxu0 0
    %1394 = vmatpush1.bf16.msra.mxu0 0
    %1395 = vmatprep.subr.bf16.mxu0 0
    %1396 = vmatpush1.bf16.msra.mxu0 0
    %1397 = vmatprep.subr.bf16.mxu0 0
    %1398 = vmatpush1.bf16.msra.mxu0 0
    %1399 = vmatprep.mubr.bf16.mxu0 0
    %1400 = vmatmul.mubr.bf16.gmra.mrb[0].mxu0 %v1170
    %v1401 = vpop.f32.mrb[0].mxu0
    %v1402 = vadd.f32 %v1123, %v1401
    %v1403 = vpop.f32.mrb[0].mxu0
    %v1404 = vpop.f32.mrb[0].mxu0
    %v1405 = vadd.f32 %v1124, %v1404
    %v1406 = vpop.f32.mrb[0].mxu0
    %1407 = vmatprep.mubr.bf16.mxu0 0
    %1408 = vmatmul.mubr.bf16.gmra.mrb[0].mxu0 %v1171
    %v1409 = vpop.f32.mrb[0].mxu0
    %v1410 = vadd.f32 %v1125, %v1409
    %v1411 = vpop.f32.mrb[0].mxu0
    %v1412 = vpop.f32.mrb[0].mxu0
    %v1413 = vadd.f32 %v1126, %v1412
    %v1414 = vpop.f32.mrb[0].mxu0
    %1415 = vmatprep.mubr.bf16.mxu0 0
    %1416 = vmatmul.mubr.bf16.gmra.mrb[0].mxu0 %v1172
    %v1417 = vpop.f32.mrb[0].mxu0
    %v1418 = vadd.f32 %v1127, %v1417
    %v1419 = vpop.f32.mrb[0].mxu0
    %v1420 = vpop.f32.mrb[0].mxu0
    %v1421 = vadd.f32 %v1128, %v1420
    %v1422 = vpop.f32.mrb[0].mxu0
    %1423 = vmatprep.mubr.bf16.mxu0 0
    %1424 = vmatmul.mubr.bf16.gmra.mrb[0].mxu0 %v1173
    %v1425 = vpop.f32.mrb[0].mxu0
    %v1426 = vadd.f32 %v1129, %v1425
    %v1427 = vpop.f32.mrb[0].mxu0
    %v1428 = vpop.f32.mrb[0].mxu0
    %v1429 = vadd.f32 %v1130, %v1428
    %v1430 = vpop.f32.mrb[0].mxu0
    %1431 = vdwg.mxu0
    %v1432 = vld [vmem:[#allocation5 + $0x170] sm:$0xf]
    %v1433 = vld [vmem:[#allocation5 + $0x174] sm:$0xf]
    %v1434 = vld [vmem:[#allocation5 + $0x178] sm:$0xf]
    %v1435 = vld [vmem:[#allocation5 + $0x17c] sm:$0xf]
    %v1436 = vld [vmem:[#allocation5 + $0x180] sm:$0xf]
    %v1437 = vld [vmem:[#allocation5 + $0x184] sm:$0xf]
    %v1438 = vld [vmem:[#allocation5 + $0x188] sm:$0xf]
    %v1439 = vld [vmem:[#allocation5 + $0x18c] sm:$0xf]
    %v1440 = vld [vmem:[#allocation5 + $0x190] sm:$0xf]
    %v1441 = vld [vmem:[#allocation5 + $0x194] sm:$0xf]
    %v1442 = vld [vmem:[#allocation5 + $0x198] sm:$0xf]
    %v1443 = vld [vmem:[#allocation5 + $0x19c] sm:$0xf]
    %v1444 = vld [vmem:[#allocation5 + $0x1a0] sm:$0xf]
    %v1445 = vld [vmem:[#allocation5 + $0x1a4] sm:$0xf]
    %v1446 = vld [vmem:[#allocation5 + $0x1a8] sm:$0xf]
    %v1447 = vld [vmem:[#allocation5 + $0x1ac] sm:$0xf]
    %v1464 = vunpack.c.l.b16 %v1432
    %v1465 = vunpack.c.l.b16 %v1433
    %v1466 = vunpack.c.l.b16 %v1434
    %v1467 = vunpack.c.l.b16 %v1435
    %v1468 = vunpack.c.l.b16 %v1436
    %v1469 = vunpack.c.l.b16 %v1437
    %v1470 = vunpack.c.l.b16 %v1438
    %v1471 = vunpack.c.l.b16 %v1439
    %v1472 = vunpack.c.l.b16 %v1440
    %v1473 = vunpack.c.l.b16 %v1441
    %v1474 = vunpack.c.l.b16 %v1442
    %v1475 = vunpack.c.l.b16 %v1443
    %v1476 = vunpack.c.l.b16 %v1444
    %v1477 = vunpack.c.l.b16 %v1445
    %v1478 = vunpack.c.l.b16 %v1446
    %v1479 = vunpack.c.l.b16 %v1447
    %v1480 = vpack.c.b16 %v1465, %v1464
    %v1481 = vpack.c.b16 %v1467, %v1466
    %v1482 = vpack.c.b16 %v1469, %v1468
    %v1483 = vpack.c.b16 %v1471, %v1470
    %v1484 = vpack.c.b16 %v1473, %v1472
    %v1485 = vpack.c.b16 %v1475, %v1474
    %v1486 = vpack.c.b16 %v1477, %v1476
    %v1487 = vpack.c.b16 %v1479, %v1478
    %1496 = vmatprep.subr.bf16.mxu0 0
    %1497 = vmatpush1.bf16.msra.mxu0 %v1480
    %1498 = vmatprep.subr.bf16.mxu0 0
    %1499 = vmatpush1.bf16.msra.mxu0 %v1481
    %1500 = vmatprep.subr.bf16.mxu0 0
    %1501 = vmatpush1.bf16.msra.mxu0 %v1482
    %1502 = vmatprep.subr.bf16.mxu0 0
    %1503 = vmatpush1.bf16.msra.mxu0 %v1483
    %1504 = vmatprep.subr.bf16.mxu0 0
    %1505 = vmatpush1.bf16.msra.mxu0 %v1484
    %1506 = vmatprep.subr.bf16.mxu0 0
    %1507 = vmatpush1.bf16.msra.mxu0 %v1485
    %1508 = vmatprep.subr.bf16.mxu0 0
    %1509 = vmatpush1.bf16.msra.mxu0 %v1486
    %1510 = vmatprep.subr.bf16.mxu0 0
    %1511 = vmatpush1.bf16.msra.mxu0 %v1487
    %1512 = vmatprep.subr.bf16.mxu0 0
    %1513 = vmatpush1.bf16.msra.mxu0 0
    %1514 = vmatprep.subr.bf16.mxu0 0
    %1515 = vmatpush1.bf16.msra.mxu0 0
    %1516 = vmatprep.subr.bf16.mxu0 0
    %1517 = vmatpush1.bf16.msra.mxu0 0
    %1518 = vmatprep.subr.bf16.mxu0 0
    %1519 = vmatpush1.bf16.msra.mxu0 0
    %1520 = vmatprep.subr.bf16.mxu0 0
    %1521 = vmatpush1.bf16.msra.mxu0 0
    %1522 = vmatprep.subr.bf16.mxu0 0
    %1523 = vmatpush1.bf16.msra.mxu0 0
    %1524 = vmatprep.subr.bf16.mxu0 0
    %1525 = vmatpush1.bf16.msra.mxu0 0
    %1526 = vmatprep.subr.bf16.mxu0 0
    %1527 = vmatpush1.bf16.msra.mxu0 0
    %1528 = vmatprep.mubr.bf16.mxu0 0
    %1529 = vmatmul.mubr.bf16.gmra.mrb[0].mxu0 %v1170
    %v1530 = vpop.f32.mrb[0].mxu0
    %v1531 = vadd.f32 0.0, %v1530
    %v1532 = vpop.f32.mrb[0].mxu0
    %v1533 = vpop.f32.mrb[0].mxu0
    %v1534 = vadd.f32 0.0, %v1533
    %v1535 = vpop.f32.mrb[0].mxu0
    %1536 = vmatprep.mubr.bf16.mxu0 0
    %1537 = vmatmul.mubr.bf16.gmra.mrb[0].mxu0 %v1171
    %v1538 = vpop.f32.mrb[0].mxu0
    %v1539 = vadd.f32 0.0, %v1538
    %v1540 = vpop.f32.mrb[0].mxu0
    %v1541 = vpop.f32.mrb[0].mxu0
    %v1542 = vadd.f32 0.0, %v1541
    %v1543 = vpop.f32.mrb[0].mxu0
    %1544 = vmatprep.mubr.bf16.mxu0 0
    %1545 = vmatmul.mubr.bf16.gmra.mrb[0].mxu0 %v1172
    %v1546 = vpop.f32.mrb[0].mxu0
    %v1547 = vadd.f32 0.0, %v1546
    %v1548 = vpop.f32.mrb[0].mxu0
    %v1549 = vpop.f32.mrb[0].mxu0
    %v1550 = vadd.f32 0.0, %v1549
    %v1551 = vpop.f32.mrb[0].mxu0
    %1552 = vmatprep.mubr.bf16.mxu0 0
    %1553 = vmatmul.mubr.bf16.gmra.mrb[0].mxu0 %v1173
    %v1554 = vpop.f32.mrb[0].mxu0
    %v1555 = vadd.f32 0.0, %v1554
    %v1556 = vpop.f32.mrb[0].mxu0
    %v1557 = vpop.f32.mrb[0].mxu0
    %v1558 = vadd.f32 0.0, %v1557
    %v1559 = vpop.f32.mrb[0].mxu0
    %1560 = vdwg.mxu0
    %v1561 = vpack.c.bf16 %v1276, %v1273
    %v1562 = vpack.c.bf16 %v1284, %v1281
    %v1563 = vpack.c.bf16 %v1292, %v1289
    %v1564 = vpack.c.bf16 %v1300, %v1297
    %v1565 = vpack.c.bf16 %v1405, %v1402
    %v1566 = vpack.c.bf16 %v1413, %v1410
    %v1567 = vpack.c.bf16 %v1421, %v1418
    %v1568 = vpack.c.bf16 %v1429, %v1426
    %v1570 = vsel %vm611, %v1561, 0
    %v1573 = vsel %vm611, %v1562, 0
    %v1576 = vsel %vm611, %v1563, 0
    %v1579 = vsel %vm611, %v1564, 0
    %v1582 = vsel %vm611, %v1565, 0
    %v1585 = vsel %vm611, %v1566, 0
    %v1588 = vsel %vm611, %v1567, 0
    %v1591 = vsel %vm611, %v1568, 0
    %1593 = vmatprep.subr.bf16.mxu0 0
    %1594 = vmatpush1.bf16.xpose.msra.mxu0 %v1582
    %1595 = vmatprep.subr.bf16.mxu0 0
    %1596 = vmatpush1.bf16.xpose.msra.mxu0 %v1585
    %1597 = vmatprep.subr.bf16.mxu0 0
    %1598 = vmatpush1.bf16.xpose.msra.mxu0 %v1588
    %1599 = vmatprep.subr.bf16.mxu0 0
    %1600 = vmatpush1.bf16.xpose.msra.mxu0 %v1591
    %1601 = vmatprep.subr.bf16.mxu0 0
    %1602 = vmatpush1.bf16.xpose.msra.mxu0 0
    %1603 = vmatprep.subr.bf16.mxu0 0
    %1604 = vmatpush1.bf16.xpose.msra.mxu0 0
    %1605 = vmatprep.subr.bf16.mxu0 0
    %1606 = vmatpush1.bf16.xpose.msra.mxu0 0
    %1607 = vmatprep.subr.bf16.mxu0 0
    %1608 = vmatpush1.bf16.xpose.msra.mxu0 0
    %1609 = vmatprep.subr.bf16.mxu0 0
    %1610 = vmatpush1.bf16.xpose.msra.mxu0 0
    %1611 = vmatprep.subr.bf16.mxu0 0
    %1612 = vmatpush1.bf16.xpose.msra.mxu0 0
    %1613 = vmatprep.subr.bf16.mxu0 0
    %1614 = vmatpush1.bf16.xpose.msra.mxu0 0
    %1615 = vmatprep.subr.bf16.mxu0 0
    %1616 = vmatpush1.bf16.xpose.msra.mxu0 0
    %1617 = vmatprep.subr.bf16.mxu0 0
    %1618 = vmatpush1.bf16.xpose.msra.mxu0 0
    %1619 = vmatprep.subr.bf16.mxu0 0
    %1620 = vmatpush1.bf16.xpose.msra.mxu0 0
    %1621 = vmatprep.subr.bf16.mxu0 0
    %1622 = vmatpush1.bf16.xpose.msra.mxu0 0
    %1623 = vmatprep.subr.bf16.mxu0 0
    %1624 = vmatpush1.bf16.xpose.msra.mxu0 0
    %1625 = vmatprep.mubr.bf16.mxu0 0
    %1626 = vmatmul.mubr.bf16.gmra.mrb[0].mxu0 %v1570
    %v1627 = vpop.f32.mrb[0].mxu0
    %v1628 = vadd.f32 %v86, %v1627
    %v1629 = vpop.f32.mrb[0].mxu0
    %v1630 = vpop.f32.mrb[0].mxu0
    %v1631 = vadd.f32 %v87, %v1630
    %v1632 = vpop.f32.mrb[0].mxu0
    %1633 = vmatprep.mubr.bf16.mxu0 0
    %1634 = vmatmul.mubr.bf16.gmra.mrb[0].mxu0 %v1573
    %v1635 = vpop.f32.mrb[0].mxu0
    %v1636 = vadd.f32 %v88, %v1635
    %v1637 = vpop.f32.mrb[0].mxu0
    %v1638 = vpop.f32.mrb[0].mxu0
    %v1639 = vadd.f32 %v89, %v1638
    %v1640 = vpop.f32.mrb[0].mxu0
    %1641 = vmatprep.mubr.bf16.mxu0 0
    %1642 = vmatmul.mubr.bf16.gmra.mrb[0].mxu0 %v1576
    %v1643 = vpop.f32.mrb[0].mxu0
    %v1644 = vadd.f32 %v90, %v1643
    %v1645 = vpop.f32.mrb[0].mxu0
    %v1646 = vpop.f32.mrb[0].mxu0
    %v1647 = vadd.f32 %v91, %v1646
    %v1648 = vpop.f32.mrb[0].mxu0
    %1649 = vmatprep.mubr.bf16.mxu0 0
    %1650 = vmatmul.mubr.bf16.gmra.mrb[0].mxu0 %v1579
    %v1651 = vpop.f32.mrb[0].mxu0
    %v1652 = vadd.f32 %v92, %v1651
    %v1653 = vpop.f32.mrb[0].mxu0
    %v1654 = vpop.f32.mrb[0].mxu0
    %v1655 = vadd.f32 %v93, %v1654
    %v1656 = vpop.f32.mrb[0].mxu0
    %1657 = vdwg.mxu0
    %v1658 = vsel %vm174, %v1628, -inf
    %1659 = vmax.xlane.f32.xlu0 %v1658
    %v1660 = vpop.xlane.xlu0 %1659
    %v1661 = vsel %vm174, %v1631, -inf
    %1662 = vmax.xlane.f32.xlu0 %v1661
    %v1663 = vpop.xlane.xlu0 %1662
    %v1664 = vsel %vm174, %v1636, -inf
    %1665 = vmax.xlane.f32.xlu0 %v1664
    %v1666 = vpop.xlane.xlu0 %1665
    %v1667 = vsel %vm174, %v1639, -inf
    %1668 = vmax.xlane.f32.xlu0 %v1667
    %v1669 = vpop.xlane.xlu0 %1668
    %v1670 = vsel %vm174, %v1644, -inf
    %1671 = vmax.xlane.f32.xlu0 %v1670
    %v1672 = vpop.xlane.xlu0 %1671
    %v1673 = vsel %vm174, %v1647, -inf
    %1674 = vmax.xlane.f32.xlu0 %v1673
    %v1675 = vpop.xlane.xlu0 %1674
    %v1676 = vsel %vm174, %v1652, -inf
    %1677 = vmax.xlane.f32.xlu0 %v1676
    %v1678 = vpop.xlane.xlu0 %1677
    %v1679 = vsel %vm174, %v1655, -inf
    %1680 = vmax.xlane.f32.xlu0 %v1679
    %v1681 = vpop.xlane.xlu0 %1680
    %v1682 = vsub.f32 %v1628, %v1660
    %v1683 = vsub.f32 %v1631, %v1663
    %v1684 = vsub.f32 %v1636, %v1666
    %v1685 = vsub.f32 %v1639, %v1669
    %v1686 = vsub.f32 %v1644, %v1672
    %v1687 = vsub.f32 %v1647, %v1675
    %v1688 = vsub.f32 %v1652, %v1678
    %v1689 = vsub.f32 %v1655, %v1681
    %v1690 = vmul.f32 %v1682, 1.442695
    %v1691 = vpow.pop %v1690
    %v1692 = vmul.f32 %v1683, 1.442695
    %v1693 = vpow.pop %v1692
    %v1694 = vmul.f32 %v1684, 1.442695
    %v1695 = vpow.pop %v1694
    %v1696 = vmul.f32 %v1685, 1.442695
    %v1697 = vpow.pop %v1696
    %v1698 = vmul.f32 %v1686, 1.442695
    %v1699 = vpow.pop %v1698
    %v1700 = vmul.f32 %v1687, 1.442695
    %v1701 = vpow.pop %v1700
    %v1702 = vmul.f32 %v1688, 1.442695
    %v1703 = vpow.pop %v1702
    %v1704 = vmul.f32 %v1689, 1.442695
    %v1705 = vpow.pop %v1704
    %v1706 = vsel %vm174, %v1691, 0.0
    %1707 = vadd.xlane.f32.xlu0 %v1706
    %v1708 = vpop.xlane.xlu0 %1707
    %v1709 = vsel %vm174, %v1693, 0.0
    %1710 = vadd.xlane.f32.xlu0 %v1709
    %v1711 = vpop.xlane.xlu0 %1710
    %v1712 = vsel %vm174, %v1695, 0.0
    %1713 = vadd.xlane.f32.xlu0 %v1712
    %v1714 = vpop.xlane.xlu0 %1713
    %v1715 = vsel %vm174, %v1697, 0.0
    %1716 = vadd.xlane.f32.xlu0 %v1715
    %v1717 = vpop.xlane.xlu0 %1716
    %v1718 = vsel %vm174, %v1699, 0.0
    %1719 = vadd.xlane.f32.xlu0 %v1718
    %v1720 = vpop.xlane.xlu0 %1719
    %v1721 = vsel %vm174, %v1701, 0.0
    %1722 = vadd.xlane.f32.xlu0 %v1721
    %v1723 = vpop.xlane.xlu0 %1722
    %v1724 = vsel %vm174, %v1703, 0.0
    %1725 = vadd.xlane.f32.xlu0 %v1724
    %v1726 = vpop.xlane.xlu0 %1725
    %v1727 = vsel %vm174, %v1705, 0.0
    %1728 = vadd.xlane.f32.xlu0 %v1727
    %v1729 = vpop.xlane.xlu0 %1728
    %v1730 = vrcp.pop %v1708
    %v1731 = vrcp.pop %v1711
    %v1732 = vrcp.pop %v1714
    %v1733 = vrcp.pop %v1717
    %v1734 = vrcp.pop %v1720
    %v1735 = vrcp.pop %v1723
    %v1736 = vrcp.pop %v1726
    %v1737 = vrcp.pop %v1729
    %v1738 = vmul.f32 %v1691, %v1730
    %v1739 = vmul.f32 %v1693, %v1731
    %v1740 = vmul.f32 %v1695, %v1732
    %v1741 = vmul.f32 %v1697, %v1733
    %v1742 = vmul.f32 %v1699, %v1734
    %v1743 = vmul.f32 %v1701, %v1735
    %v1744 = vmul.f32 %v1703, %v1736
    %v1745 = vmul.f32 %v1705, %v1737
    %v1746 = vpack.c.bf16 %v1739, %v1738
    %v1747 = vpack.c.bf16 %v1741, %v1740
    %v1748 = vpack.c.bf16 %v1743, %v1742
    %v1749 = vpack.c.bf16 %v1745, %v1744
    %v1750 = vpack.c.bf16 %v1534, %v1531
    %v1751 = vpack.c.bf16 %v1542, %v1539
    %v1752 = vpack.c.bf16 %v1550, %v1547
    %v1753 = vpack.c.bf16 %v1558, %v1555
    %v1755 = vsel %vm174, %v1746, 0
    %v1758 = vsel %vm174, %v1747, 0
    %v1761 = vsel %vm174, %v1748, 0
    %v1764 = vsel %vm174, %v1749, 0
    %1766 = vmatprep.subr.bf16.mxu0 0
    %1767 = vmatpush1.bf16.msra.mxu0 %v1750
    %1768 = vmatprep.subr.bf16.mxu0 0
    %1769 = vmatpush1.bf16.msra.mxu0 %v1751
    %1770 = vmatprep.subr.bf16.mxu0 0
    %1771 = vmatpush1.bf16.msra.mxu0 %v1752
    %1772 = vmatprep.subr.bf16.mxu0 0
    %1773 = vmatpush1.bf16.msra.mxu0 %v1753
    %1774 = vmatprep.subr.bf16.mxu0 0
    %1775 = vmatpush1.bf16.msra.mxu0 0
    %1776 = vmatprep.subr.bf16.mxu0 0
    %1777 = vmatpush1.bf16.msra.mxu0 0
    %1778 = vmatprep.subr.bf16.mxu0 0
    %1779 = vmatpush1.bf16.msra.mxu0 0
    %1780 = vmatprep.subr.bf16.mxu0 0
    %1781 = vmatpush1.bf16.msra.mxu0 0
    %1782 = vmatprep.subr.bf16.mxu0 0
    %1783 = vmatpush1.bf16.msra.mxu0 0
    %1784 = vmatprep.subr.bf16.mxu0 0
    %1785 = vmatpush1.bf16.msra.mxu0 0
    %1786 = vmatprep.subr.bf16.mxu0 0
    %1787 = vmatpush1.bf16.msra.mxu0 0
    %1788 = vmatprep.subr.bf16.mxu0 0
    %1789 = vmatpush1.bf16.msra.mxu0 0
    %1790 = vmatprep.subr.bf16.mxu0 0
    %1791 = vmatpush1.bf16.msra.mxu0 0
    %1792 = vmatprep.subr.bf16.mxu0 0
    %1793 = vmatpush1.bf16.msra.mxu0 0
    %1794 = vmatprep.subr.bf16.mxu0 0
    %1795 = vmatpush1.bf16.msra.mxu0 0
    %1796 = vmatprep.subr.bf16.mxu0 0
    %1797 = vmatpush1.bf16.msra.mxu0 0
    %1798 = vmatprep.mubr.bf16.mxu0 0
    %1799 = vmatmul.mubr.bf16.gmra.mrb[0].mxu0 %v1755
    %v1800 = vpop.f32.mrb[0].mxu0
    %v1801 = vadd.f32 0.0, %v1800
    %v1802 = vpop.f32.mrb[0].mxu0
    %v1803 = vpop.f32.mrb[0].mxu0
    %v1804 = vadd.f32 0.0, %v1803
    %v1805 = vpop.f32.mrb[0].mxu0
    %1806 = vmatprep.mubr.bf16.mxu0 0
    %1807 = vmatmul.mubr.bf16.gmra.mrb[0].mxu0 %v1758
    %v1808 = vpop.f32.mrb[0].mxu0
    %v1809 = vadd.f32 0.0, %v1808
    %v1810 = vpop.f32.mrb[0].mxu0
    %v1811 = vpop.f32.mrb[0].mxu0
    %v1812 = vadd.f32 0.0, %v1811
    %v1813 = vpop.f32.mrb[0].mxu0
    %1814 = vmatprep.mubr.bf16.mxu0 0
    %1815 = vmatmul.mubr.bf16.gmra.mrb[0].mxu0 %v1761
    %v1816 = vpop.f32.mrb[0].mxu0
    %v1817 = vadd.f32 0.0, %v1816
    %v1818 = vpop.f32.mrb[0].mxu0
    %v1819 = vpop.f32.mrb[0].mxu0
    %v1820 = vadd.f32 0.0, %v1819
    %v1821 = vpop.f32.mrb[0].mxu0
    %1822 = vmatprep.mubr.bf16.mxu0 0
    %1823 = vmatmul.mubr.bf16.gmra.mrb[0].mxu0 %v1764
    %v1824 = vpop.f32.mrb[0].mxu0
    %v1825 = vadd.f32 0.0, %v1824
    %v1826 = vpop.f32.mrb[0].mxu0
    %v1827 = vpop.f32.mrb[0].mxu0
    %v1828 = vadd.f32 0.0, %v1827
    %v1829 = vpop.f32.mrb[0].mxu0
    %1830 = vdwg.mxu0
    %v1831 = vadd.f32 %v1801, %v1809
    %v1832 = vadd.f32 %v1804, %v1812
    %v1833 = vadd.f32 %v1831, %v1817
    %v1834 = vadd.f32 %v1832, %v1820
    %v1835 = vadd.f32 %v1833, %v1825
    %v1836 = vadd.f32 %v1834, %v1828
    %v1837 = vlaneseq
    %v1838 = vshrl.u32 %v1837, 7
    %v1839 = vsub.s32 0, %v1838
    %v1840 = vrot.slane %v1131, %v1839
    %v1841 = vadd.f32 %v1835, %v1840
    %v1842 = vadd.f32 %v1836, %v1840
    %v1843 = vadd.f32 %v1113, %v1841
    %v1844 = vadd.f32 %v1114, %v1842
    %v1845 = vsel %vm171, %v1843, 0.0
    %1846 = vadd.xlane.f32.xlu0 %v1845
    %v1847 = vpop.xlane.xlu0 %1846
    %v1848 = vsel %vm171, %v1844, 0.0
    %1849 = vadd.xlane.f32.xlu0 %v1848
    %v1850 = vpop.xlane.xlu0 %1849
    %v1851 = vmul.f32 %v1847, %v894
    %v1852 = vmul.f32 %v1850, %v894
    %v1853 = vsub.f32 %v1843, %v1851
    %v1854 = vsub.f32 %v1844, %v1852
    %v1855 = vmul.f32 %v1853, %v1853
    %v1856 = vmul.f32 %v1854, %v1854
    %v1857 = vsel %vm171, %v1855, 0.0
    %1858 = vadd.xlane.f32.xlu0 %v1857
    %v1859 = vpop.xlane.xlu0 %1858
    %v1860 = vsel %vm171, %v1856, 0.0
    %1861 = vadd.xlane.f32.xlu0 %v1860
    %v1862 = vpop.xlane.xlu0 %1861
    %v1863 = vmul.f32 %v1859, %v894
    %v1864 = vmul.f32 %v1862, %v894
    %v1865 = vadd.f32 %v1863, 1e-05
    %v1866 = vadd.f32 %v1864, 1e-05
    %v1867 = vrsqrt.pop %v1865
    %v1868 = vrsqrt.pop %v1866
    %v1869 = vmul.f32 %v1853, %v1867
    %v1870 = vmul.f32 %v1854, %v1868
    %v1871 = vlaneseq
    %v1872 = vshrl.u32 %v1871, 7
    %v1873 = vsub.s32 1, %v1872
    %v1874 = vrot.slane %v1131, %v1873
    %v1875 = vmul.f32 %v1869, %v1874
    %v1876 = vmul.f32 %v1870, %v1874
    %v1877 = vlaneseq
    %v1878 = vshrl.u32 %v1877, 7
    %v1879 = vsub.s32 2, %v1878
    %v1880 = vrot.slane %v1131, %v1879
    %v1881 = vadd.f32 %v1875, %v1880
    %v1882 = vadd.f32 %v1876, %v1880
    %v1883 = vpack.c.bf16 %v1882, %v1881
    %v1884 = vld [vmem:[#allocation5 + $0x1b0] sm:$0xf]
    %v1885 = vld [vmem:[#allocation5 + $0x1b4] sm:$0xf]
    %v1886 = vld [vmem:[#allocation5 + $0x1b8] sm:$0xf]
    %v1887 = vld [vmem:[#allocation5 + $0x1bc] sm:$0xf]
    %v1888 = vlaneseq
    %v1889 = vshrl.u32 %v1888, 7
    %v1890 = vsub.s32 3, %v1889
    %v1891 = vrot.slane %v1131, %v1890
    %v1896 = vunpack.c.l.b16 %v1884
    %v1897 = vunpack.c.l.b16 %v1885
    %v1898 = vunpack.c.l.b16 %v1886
    %v1899 = vunpack.c.l.b16 %v1887
    %v1900 = vpack.c.b16 %v1897, %v1896
    %v1901 = vpack.c.b16 %v1899, %v1898
    %v1905 = vsel %vm171, %v1883, 0
    %1907 = vmatprep.subr.bf16.mxu0 0
    %1908 = vmatpush1.bf16.msra.mxu0 %v1900
    %1909 = vmatprep.subr.bf16.mxu0 0
    %1910 = vmatpush1.bf16.msra.mxu0 %v1901
    %1911 = vmatprep.subr.bf16.mxu0 0
    %1912 = vmatpush1.bf16.msra.mxu0 0
    %1913 = vmatprep.subr.bf16.mxu0 0
    %1914 = vmatpush1.bf16.msra.mxu0 0
    %1915 = vmatprep.subr.bf16.mxu0 0
    %1916 = vmatpush1.bf16.msra.mxu0 0
    %1917 = vmatprep.subr.bf16.mxu0 0
    %1918 = vmatpush1.bf16.msra.mxu0 0
    %1919 = vmatprep.subr.bf16.mxu0 0
    %1920 = vmatpush1.bf16.msra.mxu0 0
    %1921 = vmatprep.subr.bf16.mxu0 0
    %1922 = vmatpush1.bf16.msra.mxu0 0
    %1923 = vmatprep.subr.bf16.mxu0 0
    %1924 = vmatpush1.bf16.msra.mxu0 0
    %1925 = vmatprep.subr.bf16.mxu0 0
    %1926 = vmatpush1.bf16.msra.mxu0 0
    %1927 = vmatprep.subr.bf16.mxu0 0
    %1928 = vmatpush1.bf16.msra.mxu0 0
    %1929 = vmatprep.subr.bf16.mxu0 0
    %1930 = vmatpush1.bf16.msra.mxu0 0
    %1931 = vmatprep.subr.bf16.mxu0 0
    %1932 = vmatpush1.bf16.msra.mxu0 0
    %1933 = vmatprep.subr.bf16.mxu0 0
    %1934 = vmatpush1.bf16.msra.mxu0 0
    %1935 = vmatprep.subr.bf16.mxu0 0
    %1936 = vmatpush1.bf16.msra.mxu0 0
    %1937 = vmatprep.subr.bf16.mxu0 0
    %1938 = vmatpush1.bf16.msra.mxu0 0
    %1939 = vmatprep.mubr.bf16.mxu0 0
    %1940 = vmatmul.mubr.bf16.gmra.mrb[0].mxu0 %v1905
    %v1941 = vpop.f32.mrb[0].mxu0
    %v1942 = vadd.f32 %v1891, %v1941
    %v1943 = vpop.f32.mrb[0].mxu0
    %v1944 = vpop.f32.mrb[0].mxu0
    %v1945 = vadd.f32 %v1891, %v1944
    %v1946 = vpop.f32.mrb[0].mxu0
    %1947 = vdwg.mxu0
    %v1948 = vmax.f32 %v1942, 0.0
    %v1949 = vmax.f32 %v1945, 0.0
    %v1950 = vpack.c.bf16 %v1949, %v1948
    %v1951 = vld [vmem:[#allocation5 + $0x1c0] sm:$0xf]
    %v1952 = vld [vmem:[#allocation5 + $0x1c4] sm:$0xf]
    %v1953 = vld [vmem:[#allocation5 + $0x1c8] sm:$0xf]
    %v1954 = vld [vmem:[#allocation5 + $0x1cc] sm:$0xf]
    %v1955 = vld [vmem:[#allocation5 + $0x1d0] sm:$0xf]
    %v1956 = vld [vmem:[#allocation5 + $0x1d4] sm:$0xf]
    %v1957 = vld [vmem:[#allocation5 + $0x1d8] sm:$0xf]
    %v1958 = vld [vmem:[#allocation5 + $0x1dc] sm:$0xf]
    %v1959 = vlaneseq
    %v1960 = vshrl.u32 %v1959, 7
    %v1961 = vsub.s32 4, %v1960
    %v1962 = vrot.slane %v1131, %v1961
    %v1971 = vunpack.c.l.b16 %v1951
    %v1972 = vunpack.c.l.b16 %v1952
    %v1973 = vunpack.c.l.b16 %v1953
    %v1974 = vunpack.c.l.b16 %v1954
    %v1975 = vunpack.c.l.b16 %v1955
    %v1976 = vunpack.c.l.b16 %v1956
    %v1977 = vunpack.c.l.b16 %v1957
    %v1978 = vunpack.c.l.b16 %v1958
    %v1979 = vpack.c.b16 %v1972, %v1971
    %v1980 = vpack.c.b16 %v1974, %v1973
    %v1981 = vpack.c.b16 %v1976, %v1975
    %v1982 = vpack.c.b16 %v1978, %v1977
    %v1988 = vsel %vm174, %v1950, 0
    %1990 = vmatprep.subr.bf16.mxu0 0
    %1991 = vmatpush1.bf16.msra.mxu0 %v1979
    %1992 = vmatprep.subr.bf16.mxu0 0
    %1993 = vmatpush1.bf16.msra.mxu0 %v1980
    %1994 = vmatprep.subr.bf16.mxu0 0
    %1995 = vmatpush1.bf16.msra.mxu0 %v1981
    %1996 = vmatprep.subr.bf16.mxu0 0
    %1997 = vmatpush1.bf16.msra.mxu0 %v1982
    %1998 = vmatprep.subr.bf16.mxu0 0
    %1999 = vmatpush1.bf16.msra.mxu0 0
    %2000 = vmatprep.subr.bf16.mxu0 0
    %2001 = vmatpush1.bf16.msra.mxu0 0
    %2002 = vmatprep.subr.bf16.mxu0 0
    %2003 = vmatpush1.bf16.msra.mxu0 0
    %2004 = vmatprep.subr.bf16.mxu0 0
    %2005 = vmatpush1.bf16.msra.mxu0 0
    %2006 = vmatprep.subr.bf16.mxu0 0
    %2007 = vmatpush1.bf16.msra.mxu0 0
    %2008 = vmatprep.subr.bf16.mxu0 0
    %2009 = vmatpush1.bf16.msra.mxu0 0
    %2010 = vmatprep.subr.bf16.mxu0 0
    %2011 = vmatpush1.bf16.msra.mxu0 0
    %2012 = vmatprep.subr.bf16.mxu0 0
    %2013 = vmatpush1.bf16.msra.mxu0 0
    %2014 = vmatprep.subr.bf16.mxu0 0
    %2015 = vmatpush1.bf16.msra.mxu0 0
    %2016 = vmatprep.subr.bf16.mxu0 0
    %2017 = vmatpush1.bf16.msra.mxu0 0
    %2018 = vmatprep.subr.bf16.mxu0 0
    %2019 = vmatpush1.bf16.msra.mxu0 0
    %2020 = vmatprep.subr.bf16.mxu0 0
    %2021 = vmatpush1.bf16.msra.mxu0 0
    %2022 = vmatprep.mubr.bf16.mxu0 0
    %2023 = vmatmul.mubr.bf16.gmra.mrb[0].mxu0 %v1988
    %v2024 = vpop.f32.mrb[0].mxu0
    %v2025 = vadd.f32 %v1962, %v2024
    %v2026 = vpop.f32.mrb[0].mxu0
    %v2027 = vpop.f32.mrb[0].mxu0
    %v2028 = vadd.f32 %v1962, %v2027
    %v2029 = vpop.f32.mrb[0].mxu0
    %2030 = vdwg.mxu0
    %v2031 = vadd.f32 %v1881, %v2025
    %v2032 = vadd.f32 %v1882, %v2028
    %v2033 = vsel %vm171, %v2031, 0.0
    %2034 = vadd.xlane.f32.xlu0 %v2033
    %v2035 = vpop.xlane.xlu0 %2034
    %v2036 = vsel %vm171, %v2032, 0.0
    %2037 = vadd.xlane.f32.xlu0 %v2036
    %v2038 = vpop.xlane.xlu0 %2037
    %v2039 = vmul.f32 %v2035, %v894
    %v2040 = vmul.f32 %v2038, %v894
    %v2041 = vsub.f32 %v2031, %v2039
    %v2042 = vsub.f32 %v2032, %v2040
    %v2043 = vmul.f32 %v2041, %v2041
    %v2044 = vmul.f32 %v2042, %v2042
    %v2045 = vsel %vm171, %v2043, 0.0
    %2046 = vadd.xlane.f32.xlu0 %v2045
    %v2047 = vpop.xlane.xlu0 %2046
    %v2048 = vsel %vm171, %v2044, 0.0
    %2049 = vadd.xlane.f32.xlu0 %v2048
    %v2050 = vpop.xlane.xlu0 %2049
    %v2051 = vmul.f32 %v2047, %v894
    %v2052 = vmul.f32 %v2050, %v894
    %v2053 = vadd.f32 %v2051, 1e-05
    %v2054 = vadd.f32 %v2052, 1e-05
    %v2055 = vrsqrt.pop %v2053
    %v2056 = vrsqrt.pop %v2054
    %v2057 = vmul.f32 %v2041, %v2055
    %v2058 = vmul.f32 %v2042, %v2056
    %v2059 = vlaneseq
    %v2060 = vshrl.u32 %v2059, 7
    %v2061 = vsub.s32 5, %v2060
    %v2062 = vrot.slane %v1131, %v2061
    %v2063 = vmul.f32 %v2057, %v2062
    %v2064 = vmul.f32 %v2058, %v2062
    %v2065 = vlaneseq
    %v2066 = vshrl.u32 %v2065, 7
    %v2067 = vsub.s32 6, %v2066
    %v2068 = vrot.slane %v1131, %v2067
    %v2069 = vadd.f32 %v2063, %v2068
    %v2070 = vadd.f32 %v2064, %v2068
    %v2071 = vpack.c.bf16 %v2070, %v2069
    %v2072 = vld [vmem:[#allocation5 + $0x1e8] sm:$0xf]
    %v2073 = vld [vmem:[#allocation5 + $0x1ec] sm:$0xf]
    %v2074 = vld [vmem:[#allocation5 + $0x1f0] sm:$0xf]
    %v2075 = vld [vmem:[#allocation5 + $0x1f4] sm:$0xf]
    %v2076 = vlaneseq
    %v2077 = vshrl.u32 %v2076, 7
    %v2078 = vsub.s32 1, %v2077
    %v2079 = vrot.slane %v57, %v2078
    %v2084 = vunpack.c.l.b16 %v2072
    %v2085 = vunpack.c.l.b16 %v2073
    %v2086 = vunpack.c.l.b16 %v2074
    %v2087 = vunpack.c.l.b16 %v2075
    %v2088 = vpack.c.b16 %v2085, %v2084
    %v2089 = vpack.c.b16 %v2087, %v2086
    %v2093 = vsel %vm171, %v2071, 0
    %2095 = vmatprep.subr.bf16.mxu0 0
    %2096 = vmatpush1.bf16.msra.mxu0 %v2088
    %2097 = vmatprep.subr.bf16.mxu0 0
    %2098 = vmatpush1.bf16.msra.mxu0 %v2089
    %2099 = vmatprep.subr.bf16.mxu0 0
    %2100 = vmatpush1.bf16.msra.mxu0 0
    %2101 = vmatprep.subr.bf16.mxu0 0
    %2102 = vmatpush1.bf16.msra.mxu0 0
    %2103 = vmatprep.subr.bf16.mxu0 0
    %2104 = vmatpush1.bf16.msra.mxu0 0
    %2105 = vmatprep.subr.bf16.mxu0 0
    %2106 = vmatpush1.bf16.msra.mxu0 0
    %2107 = vmatprep.subr.bf16.mxu0 0
    %2108 = vmatpush1.bf16.msra.mxu0 0
    %2109 = vmatprep.subr.bf16.mxu0 0
    %2110 = vmatpush1.bf16.msra.mxu0 0
    %2111 = vmatprep.subr.bf16.mxu0 0
    %2112 = vmatpush1.bf16.msra.mxu0 0
    %2113 = vmatprep.subr.bf16.mxu0 0
    %2114 = vmatpush1.bf16.msra.mxu0 0
    %2115 = vmatprep.subr.bf16.mxu0 0
    %2116 = vmatpush1.bf16.msra.mxu0 0
    %2117 = vmatprep.subr.bf16.mxu0 0
    %2118 = vmatpush1.bf16.msra.mxu0 0
    %2119 = vmatprep.subr.bf16.mxu0 0
    %2120 = vmatpush1.bf16.msra.mxu0 0
    %2121 = vmatprep.subr.bf16.mxu0 0
    %2122 = vmatpush1.bf16.msra.mxu0 0
    %2123 = vmatprep.subr.bf16.mxu0 0
    %2124 = vmatpush1.bf16.msra.mxu0 0
    %2125 = vmatprep.subr.bf16.mxu0 0
    %2126 = vmatpush1.bf16.msra.mxu0 0
    %2127 = vmatprep.mubr.bf16.mxu0 0
    %2128 = vmatmul.mubr.bf16.gmra.mrb[0].mxu0 %v2093
    %v2129 = vpop.f32.mrb[0].mxu0
    %v2130 = vadd.f32 %v2079, %v2129
    %v2131 = vpop.f32.mrb[0].mxu0
    %v2132 = vpop.f32.mrb[0].mxu0
    %v2133 = vadd.f32 %v2079, %v2132
    %v2134 = vpop.f32.mrb[0].mxu0
    %2135 = vdwg.mxu0
    %v2136 = vmax.f32 %v2130, 0.0
    %v2137 = vmax.f32 %v2133, 0.0
    %v2138 = vlaneseq
    %v2139 = vshrl.u32 %v2138, 7
    %v2140 = vsub.s32 2, %v2139
    %v2141 = vrot.slane %v57, %v2140
    %v2142 = vmul.f32 %v2136, %v2141
    %v2143 = vmul.f32 %v2137, %v2141
    %v2144 = vsel %vm109, %v2142, 0.0
    %2145 = vadd.xlane.f32.xlu0 %v2144
    %v2146 = vpop.xlane.xlu0 %2145
    %v2147 = vsel %vm109, %v2143, 0.0
    %2148 = vadd.xlane.f32.xlu0 %v2147
    %v2149 = vpop.xlane.xlu0 %2148
    %v2150 = vlaneseq
    %v2151 = vshrl.u32 %v2150, 7
    %v2152 = vsub.s32 3, %v2151
    %v2153 = vrot.slane %v57, %v2152
    %v2154 = vadd.f32 %v2146, %v2153
    %v2155 = vadd.f32 %v2149, %v2153
    %2157 = vset.pattern.permute.xlu0 0
    %2158 = vperm.xlu0 %2157, %v2154
    %v2159 = vpop.permute.xlu0 %2158
    %2162 = vset.pattern.permute.xlu0 0
    %2163 = vperm.xlu0 %2162, %v2155
    %v2164 = vpop.permute.xlu0 %2163
    %2166 = vst [vmem:[#allocation8] sm:$0xff] %v2159
    %2167 = vst [vmem:[#allocation8 + $0x8] sm:$0xff] %v2164
    // Predicated region
    $region26: #{tpu_custom_call.1} parent=1 // pred_check
      _
    $region27: #{tpu_custom_call.1} parent=1 // pred_check_branch
      %2169 = sbr.rel (0) target = $region29
    $region28: #{tpu_custom_call.1} parent=1 // pred_region
      %s2171 = ssub.s32 256, 256
      %2172 = vsyncadd [#allocation4], %s2171
      %s2173 = sshll.u32 [#allocation8], 4
      %s2174 = int_to_ptr.vmem [resolvable:$true] %s2173
      %2179 = dma.vmem_to_hbm [thread:$0]  %s2174, 256, %s3, [#allocation4], 128, 128, 8
    $region29: #{tpu_custom_call.1} parent=1 // pred_fallthru
      _
    // Predicated region
    $region30: #{tpu_custom_call.1} parent=1 // pred_check
      _
    $region31: #{tpu_custom_call.1} parent=1 // pred_check_branch
      %2181 = sbr.rel (0) target = $region33
    $region32: #{tpu_custom_call.1} parent=1 // pred_region
      %2182 = dma.done [#allocation4], 256
    $region33: #{tpu_custom_call.1} parent=1 // pred_fallthru
      _
    %2183 = vsyncpa [#allocation3], 1
    %2184 = vsyncpa [#allocation6], 1
    %2185 = vsyncpa [#allocation4], 1

</llo_original>
